<compile_context>
chip_gen: v6e
topology: v6e:2x2x1
jax: 0.10.0
libtpu: 0.0.40
codegen_flags: <defaults>
</compile_context>

<pallas_src>
import functools
import math

import jax
import jax.numpy as jnp
from jax import lax
from jax.experimental import pallas as pl
from jax.experimental.pallas import tpu as pltpu


def _round_up(x, m):
    return (x + m - 1) // m * m


def _default_vmem_limit():
    # ~3/4 of physical VMEM: ~48 MiB on v7x (64 MiB phys), ~96 MiB on
    # v5e/v6e (128 MiB phys).  Fallback is safe on every generation.
    try:
        cap = int(pltpu.get_tpu_info().vmem_capacity_bytes)
        return min(max(cap * 3 // 4, 32 * 1024 * 1024), 100 * 1024 * 1024)
    except Exception:  # pragma: no cover - info API unavailable
        return 48 * 1024 * 1024


def _clip_loss_kernel(temp_ref, img_ref, txt_ref,
                      row_lse_ref, diag_ref, col_m_ref, col_l_ref,
                      m_row, l_row,
                      *, batch, tm, tn, ratio, pad, single_exp_max_temp):
    i = pl.program_id(0)                 # image row block (resident, "parallel")
    j = pl.program_id(1)                 # text col block (streamed, inner axis)
    n_j = pl.num_programs(1)

    temp = temp_ref[0]                   # scalar temperature in SMEM

    # ---- reset the per-row-block online-lse state at the start of a sweep --
    @pl.when(j == 0)
    def _():
        m_row[...] = jnp.full_like(m_row, -jnp.inf)
        l_row[...] = jnp.zeros_like(l_row)

    img = img_ref[...]                   # [TM, D], original dtype
    txt = txt_ref[...]                   # [TN, D], original dtype

    # Logits tile: contract the shared D axis directly on the MXU (same
    # 'bkd'-style contraction the reference flash kernels use), f32 acc.
    # TODO(synk): if a per-step vxpose of the text tile shows up in the
    # bundle dump, feed text pre-transposed as [D, B] instead.
    s = lax.dot_general(img, txt, (((1,), (1,)), ((), ())),
                        preferred_element_type=jnp.float32)     # [TM, TN]
    # Temperature on the f32 tile (O(TM*TN)); diag gets temp in the epilogue.
    s = s * temp

    if pad:
        # Boundary masking for the padded rows/cols of a ragged batch
        # (only compiled in when padding exists).
        row_ids = i * tm + lax.broadcasted_iota(jnp.int32, (tm, 1), 0)
        col_ids = j * tn + lax.broadcasted_iota(jnp.int32, (1, tn), 1)
        s = jnp.where((row_ids < batch) & (col_ids < batch), s, -jnp.inf)

    # ---- diagonal (label) logits straight from the features ---------------
    # Col block j covers global rows [j*TN, (j+1)*TN); it intersects the
    # diagonal of row block i iff 0 <= j - i*ratio < ratio.  O(B*D) total.
    blk_off = j - i * ratio

    @pl.when((blk_off >= 0) & (blk_off < ratio))
    def _():
        off = pl.multiple_of(blk_off * tn, tn)
        img_sub = img_ref[pl.ds(off, tn), :].astype(jnp.float32)
        d = jnp.sum(img_sub * txt.astype(jnp.float32), axis=-1, keepdims=True)
        diag_ref[pl.ds(off, tn), :] = d          # unscaled; temp in epilogue

    # ---- online log-sum-exp updates ----------------------------------------
    tile_row_max = jnp.max(s, axis=-1, keepdims=True)            # [TM, 1]
    m_prev = m_row[...]
    m_new = jnp.maximum(m_prev, tile_row_max)
    alpha = jnp.exp(m_prev - m_new)                              # [TM, 1]
    cm = jnp.max(s, axis=0, keepdims=True)                       # [1, TN]
    col_m_ref[0] = cm

    # Fast path: one full-tile exp feeds both reductions.  Safe while the
    # per-tile |logit| stays well inside f32 exp range, which holds for
    # L2-normalized CLIP features whenever temp <= single_exp_max_temp.
    fast = temp <= single_exp_max_temp

    @pl.when(fast)
    def _():
        e = jnp.exp(s)                                           # single exp
        l_row[...] = l_row[...] * alpha + (
            jnp.sum(e, axis=-1, keepdims=True) * jnp.exp(-m_new))
        col_l_ref[0] = jnp.sum(e, axis=0, keepdims=True) * jnp.exp(-cm)

    @pl.when(jnp.logical_not(fast))
    def _():
        # Fully shift-safe fallback (temp clamp allows up to 100).
        l_row[...] = l_row[...] * alpha + jnp.sum(
            jnp.exp(s - m_new), axis=-1, keepdims=True)
        col_l_ref[0] = jnp.sum(jnp.exp(s - cm), axis=0, keepdims=True)

    m_row[...] = m_new

    # ---- finalize the per-row logsumexp at the end of the j sweep ----------
    @pl.when(j == n_j - 1)
    def _():
        row_lse_ref[...] = m_row[...] + jnp.log(l_row[...])


def clip_loss_a(image_features, text_features, logit_scale, temperature=None,
                *, block_m=1024, block_n=256, single_exp_max_temp=40.0,
                vmem_limit_bytes=None):
    """Mirrors CLIPLossA.forward; returns (total_loss, texts_loss, images_loss)."""
    B, D = image_features.shape
    assert text_features.shape == (B, D)

    # Parameter clamp + exp is cheap scalar glue; keep it in plain JAX.
    clamped = jnp.clip(logit_scale, math.log(1.0), math.log(100.0))
    temp = jnp.exp(clamped) if temperature is None else jnp.asarray(temperature)
    temp = jnp.reshape(temp.astype(jnp.float32), (1,))

    # Tile selection: TN multiple of 128 (lane-dense column-partial outputs),
    # TM a multiple of TN (diagonal-tile logic), batch padded to a TM multiple.
    tn = max(128, min(_round_up(block_n, 128), _round_up(B, 128)))
    tm = max(tn, min(_round_up(block_m, tn), _round_up(B, tn)))
    b_pad = _round_up(B, tm)
    n_i, n_j = b_pad // tm, b_pad // tn
    ratio = tm // tn
    pad = b_pad != B

    img, txt = image_features, text_features
    if pad:
        img = jnp.pad(img, ((0, b_pad - B), (0, 0)))
        txt = jnp.pad(txt, ((0, b_pad - B), (0, 0)))

    itemsize = jnp.dtype(img.dtype).itemsize
    cost = pl.CostEstimate(
        flops=2 * b_pad * b_pad * D + 2 * b_pad * D,
        transcendentals=b_pad * b_pad,
        # images read once; text re-streamed once per row block; small f32 outs.
        bytes_accessed=((1 + n_i) * b_pad * D * itemsize
                        + (2 + 2 * n_i) * b_pad * 4))

    if vmem_limit_bytes is None:
        vmem_limit_bytes = _default_vmem_limit()

    grid_spec = pltpu.PrefetchScalarGridSpec(
        num_scalar_prefetch=0,
        grid=(n_i, n_j),
        in_specs=[
            pl.BlockSpec(memory_space=pltpu.MemorySpace.SMEM),   # temperature
            pl.BlockSpec((tm, D), lambda i, j: (i, 0)),          # image rows (resident)
            # TODO(synk): add pipeline_mode=pl.Buffered(3) here if the text
            # DMA is still exposed on v5e after the larger row tile.
            pl.BlockSpec((tn, D), lambda i, j: (j, 0)),          # text rows (streamed)
        ],
        out_specs=[
            pl.BlockSpec((tm, 1), lambda i, j: (i, 0)),          # per-row lse
            pl.BlockSpec((tm, 1), lambda i, j: (i, 0)),          # per-row diag (unscaled)
            pl.BlockSpec((1, 1, tn), lambda i, j: (i, 0, j)),    # col tile max
            pl.BlockSpec((1, 1, tn), lambda i, j: (i, 0, j)),    # col tile sumexp
        ],
        scratch_shapes=[
            pltpu.VMEM((tm, 1), jnp.float32),                    # m_row
            pltpu.VMEM((tm, 1), jnp.float32),                    # l_row
        ])

    kernel = functools.partial(
        _clip_loss_kernel, batch=B, tm=tm, tn=tn, ratio=ratio, pad=pad,
        single_exp_max_temp=float(single_exp_max_temp))

    row_lse, diag_raw, col_m, col_l = pl.pallas_call(
        kernel,
        out_shape=(
            jax.ShapeDtypeStruct((b_pad, 1), jnp.float32),
            jax.ShapeDtypeStruct((b_pad, 1), jnp.float32),
            jax.ShapeDtypeStruct((n_i, 1, b_pad), jnp.float32),
            jax.ShapeDtypeStruct((n_i, 1, b_pad), jnp.float32),
        ),
        grid_spec=grid_spec,
        compiler_params=pltpu.CompilerParams(
            # No state is carried across the row axis, so it can be split
            # across v7x's two TensorCores; the j (text) axis stays inner.
            dimension_semantics=("parallel", "arbitrary"),
            vmem_limit_bytes=int(vmem_limit_bytes)),
        cost_estimate=cost,
    )(temp, img, txt)

    # ---- tiny O(n_i * B) epilogue in plain JAX ------------------------------
    # (also serves as the per-core partial merge when the row axis is split
    #  across v7x's TensorCores)
    t = temp[0]
    row_lse = row_lse[:B, 0]
    diag = t * diag_raw[:B, 0]
    cm = col_m[:, 0, :B]
    cl = col_l[:, 0, :B]
    m = jnp.max(cm, axis=0)
    col_lse = m + jnp.log(jnp.sum(cl * jnp.exp(cm - m), axis=0))

    images_loss = jnp.mean(row_lse - diag)
    texts_loss = jnp.mean(col_lse - diag)
    total_loss = 0.5 * (images_loss + texts_loss)
    return total_loss, texts_loss, images_loss


def _reference(image_features, text_features, logit_scale, temperature=None):
    clamped = jnp.clip(logit_scale, math.log(1.0), math.log(100.0))
    temp = (jnp.exp(clamped) if temperature is None
            else jnp.asarray(temperature, jnp.float32))
    logits = temp * (image_features.astype(jnp.float32)
                     @ text_features.astype(jnp.float32).T)
    labels = jnp.arange(logits.shape[0])

    def ce(lg):
        lse = jax.scipy.special.logsumexp(lg, axis=-1)
        tgt = lg[jnp.arange(lg.shape[0]), labels]
        return jnp.mean(lse - tgt)

    images_loss = ce(logits)
    texts_loss = ce(logits.T)
    return (images_loss + texts_loss) / 2, texts_loss, images_loss


def _check(out, ref):
    for a, b in zip(out, ref):
        assert jnp.allclose(a, b, rtol=5e-4, atol=5e-3), (a, b)


if __name__ == "__main__":
    key = jax.random.PRNGKey(0)
    k1, k2, k3, k4 = jax.random.split(key, 4)

    def unit(k, shape):
        x = jax.random.normal(k, shape, dtype=jnp.float32)
        return x / jnp.linalg.norm(x, axis=-1, keepdims=True)

    # --- Test 1: aligned batch, fast single-exp path, 2x2 grid --------------
    B, D = 256, 64
    img = unit(k1, (B, D))
    txt = unit(k2, (B, D))
    logit_scale = jnp.asarray(math.log(1.0 / 0.07), dtype=jnp.float32)

    out = clip_loss_a(img, txt, logit_scale, block_m=128, block_n=128)
    jax.block_until_ready(out)
    _check(out, _reference(img, txt, logit_scale))

    # --- Test 2: ragged batch (padding), clamped temp=100 (two-exp fallback),
    #             asymmetric tiles tm=256 / tn=128 (ratio 2 diagonal logic) --
    B2 = 200
    img2 = unit(k3, (B2, D))
    txt2 = unit(k4, (B2, D))
    big_scale = jnp.asarray(6.0, dtype=jnp.float32)   # exp(6) > 100 -> clamps

    out2 = clip_loss_a(img2, txt2, big_scale, block_m=256, block_n=128)
    jax.block_until_ready(out2)
    _check(out2, _reference(img2, txt2, big_scale))

    print("KERNEL_OK")
</pallas_src>

<mosaic_0001>
module attributes {stable_mosaic.version = 11 : i64} {
  func.func @_clip_loss_kernel(%arg0: i32, %arg1: i32, %arg2: memref<1xf32, #tpu.memory_space<smem>>, %arg3: memref<128x64xf32, #tpu.memory_space<vmem>>, %arg4: memref<128x64xf32, #tpu.memory_space<vmem>>, %arg5: memref<128x1xf32, #tpu.memory_space<vmem>>, %arg6: memref<128x1xf32, #tpu.memory_space<vmem>>, %arg7: memref<1x1x128xf32, #tpu.memory_space<vmem>>, %arg8: memref<1x1x128xf32, #tpu.memory_space<vmem>>, %arg9: memref<128x1xf32, #tpu.memory_space<vmem>>, %arg10: memref<128x1xf32, #tpu.memory_space<vmem>>) attributes {dimension_semantics = [#tpu.dimension_semantics<parallel>, #tpu.dimension_semantics<arbitrary>], iteration_bounds = array<i64: 2, 2>, scalar_prefetch = 0 : i64, scratch_operands = 2 : i64, tpu.core_type = #tpu.core_type<tc>, window_params = [{transform_indices = @transform_0, window_bounds = array<i64: 1>}, {transform_indices = @transform_1, window_bounds = array<i64: 128, 64>}, {transform_indices = @transform_2, window_bounds = array<i64: 128, 64>}, {transform_indices = @transform_3, window_bounds = array<i64: 128, 1>}, {transform_indices = @transform_4, window_bounds = array<i64: 128, 1>}, {transform_indices = @transform_5, window_bounds = array<i64: 1, 1, 128>}, {transform_indices = @transform_6, window_bounds = array<i64: 1, 1, 128>}]} {
    %c0 = arith.constant 0 : index
    %0 = memref.load %arg2[%c0] : memref<1xf32, #tpu.memory_space<smem>>
    %c0_i32 = arith.constant 0 : i32
    %1 = arith.cmpi eq, %arg1, %c0_i32 : i32
    %2 = arith.extui %1 : i1 to i32
    %c0_i32_0 = arith.constant 0 : i32
    %3 = arith.cmpi ne, %2, %c0_i32_0 : i32
    scf.if %3 {
      %cst_22 = arith.constant 0xFF800000 : f32
      %37 = vector.broadcast %cst_22 : f32 to vector<128x1xf32>
      %c0_23 = arith.constant 0 : index
      %c0_24 = arith.constant 0 : index
      %38 = vector.load %arg9[%c0_23, %c0_24] : memref<128x1xf32, #tpu.memory_space<vmem>>, vector<128x1xf32>
      tpu.vector_store %arg9[%c0_23, %c0_24], %37 {strides = array<i32>} : memref<128x1xf32, #tpu.memory_space<vmem>>, vector<128x1xf32>,
      %cst_25 = arith.constant 0.000000e+00 : f32
      %39 = vector.broadcast %cst_25 : f32 to vector<128x1xf32>
      %c0_26 = arith.constant 0 : index
      %c0_27 = arith.constant 0 : index
      %40 = vector.load %arg10[%c0_26, %c0_27] : memref<128x1xf32, #tpu.memory_space<vmem>>, vector<128x1xf32>
      tpu.vector_store %arg10[%c0_26, %c0_27], %39 {strides = array<i32>} : memref<128x1xf32, #tpu.memory_space<vmem>>, vector<128x1xf32>,
    } else {
    }
    %c0_1 = arith.constant 0 : index
    %c0_2 = arith.constant 0 : index
    %4 = vector.load %arg3[%c0_1, %c0_2] : memref<128x64xf32, #tpu.memory_space<vmem>>, vector<128x64xf32>
    %c0_3 = arith.constant 0 : index
    %c0_4 = arith.constant 0 : index
    %5 = vector.load %arg4[%c0_3, %c0_4] : memref<128x64xf32, #tpu.memory_space<vmem>>, vector<128x64xf32>
    %cst = arith.constant dense<0.000000e+00> : vector<128x128xf32>
    %6 = tpu.matmul %4, %5, %cst {dimension_numbers = #tpu.dot_dimension_numbers<[1], [1], [0], [0], [0, 0, 1, 0], [], []>} : vector<128x64xf32>, vector<128x64xf32>, vector<128x128xf32> -> vector<128x128xf32>
    %7 = vector.broadcast %0 : f32 to vector<128x128xf32>
    %8 = arith.mulf %6, %7 : vector<128x128xf32>
    %c1_i32 = arith.constant 1 : i32
    %9 = arith.muli %arg0, %c1_i32 : i32
    %10 = arith.subi %arg1, %9 : i32
    %c0_i32_5 = arith.constant 0 : i32
    %11 = arith.cmpi sge, %10, %c0_i32_5 : i32
    %c1_i32_6 = arith.constant 1 : i32
    %12 = arith.cmpi slt, %10, %c1_i32_6 : i32
    %13 = arith.andi %11, %12 : i1
    %14 = arith.extui %13 : i1 to i32
    %c0_i32_7 = arith.constant 0 : i32
    %15 = arith.cmpi ne, %14, %c0_i32_7 : i32
    scf.if %15 {
      %c128_i32 = arith.constant 128 : i32
      %37 = arith.muli %10, %c128_i32 : i32
      %38 = tpu.assume_multiple %37, 128 : i32
      %39 = arith.index_cast %38 : i32 to index
      %c0_22 = arith.constant 0 : index
      %40 = vector.load %arg3[%39, %c0_22] : memref<128x64xf32, #tpu.memory_space<vmem>>, vector<128x64xf32>
      %41 = arith.mulf %40, %5 : vector<128x64xf32>
      %cst_23 = arith.constant dense<0.000000e+00> : vector<128xf32>
      %42 = vector.multi_reduction <add>, %41, %cst_23 [1] : vector<128x64xf32> to vector<128xf32>
      %43 = vector.shape_cast %42 : vector<128xf32> to vector<128x1xf32>
      %44 = arith.index_cast %38 : i32 to index
      %c0_24 = arith.constant 0 : index
      %45 = vector.load %arg6[%44, %c0_24] : memref<128x1xf32, #tpu.memory_space<vmem>>, vector<128x1xf32>
      tpu.vector_store %arg6[%44, %c0_24], %43 {strides = array<i32>} : memref<128x1xf32, #tpu.memory_space<vmem>>, vector<128x1xf32>,
    } else {
    }
    %cst_8 = arith.constant dense<0xFF800000> : vector<128xf32>
    %16 = vector.multi_reduction <maximumf>, %8, %cst_8 [1] : vector<128x128xf32> to vector<128xf32>
    %17 = vector.shape_cast %16 : vector<128xf32> to vector<128x1xf32>
    %c0_9 = arith.constant 0 : index
    %c0_10 = arith.constant 0 : index
    %18 = vector.load %arg9[%c0_9, %c0_10] : memref<128x1xf32, #tpu.memory_space<vmem>>, vector<128x1xf32>
    %19 = arith.maximumf %18, %17 : vector<128x1xf32>
    %20 = arith.subf %18, %19 : vector<128x1xf32>
    %21 = math.exp %20 : vector<128x1xf32>
    %cst_11 = arith.constant dense<0xFF800000> : vector<128xf32>
    %22 = vector.multi_reduction <maximumf>, %8, %cst_11 [0] : vector<128x128xf32> to vector<128xf32>
    %23 = vector.shape_cast %22 : vector<128xf32> to vector<1x128xf32>
    %c0_12 = arith.constant 0 : index
    %c0_13 = arith.constant 0 : index
    %c0_14 = arith.constant 0 : index
    %24 = vector.load %arg7[%c0_12, %c0_13, %c0_14] : memref<1x1x128xf32, #tpu.memory_space<vmem>>, vector<1x1x128xf32>
    %25 = vector.shape_cast %24 : vector<1x1x128xf32> to vector<1x128xf32>
    %26 = vector.shape_cast %23 : vector<1x128xf32> to vector<1x1x128xf32>
    tpu.vector_store %arg7[%c0_12, %c0_13, %c0_14], %26 {strides = array<i32>} : memref<1x1x128xf32, #tpu.memory_space<vmem>>, vector<1x1x128xf32>,
    %cst_15 = arith.constant 4.000000e+01 : f32
    %27 = arith.cmpf ole, %0, %cst_15 : f32
    %28 = arith.extui %27 : i1 to i32
    %c0_i32_16 = arith.constant 0 : i32
    %29 = arith.cmpi ne, %28, %c0_i32_16 : i32
    scf.if %29 {
      %37 = math.exp %8 : vector<128x128xf32>
      %c0_22 = arith.constant 0 : index
      %c0_23 = arith.constant 0 : index
      %38 = vector.load %arg10[%c0_22, %c0_23] : memref<128x1xf32, #tpu.memory_space<vmem>>, vector<128x1xf32>
      %39 = arith.mulf %38, %21 : vector<128x1xf32>
      %cst_24 = arith.constant dense<0.000000e+00> : vector<128xf32>
      %40 = vector.multi_reduction <add>, %37, %cst_24 [1] : vector<128x128xf32> to vector<128xf32>
      %41 = vector.shape_cast %40 : vector<128xf32> to vector<128x1xf32>
      %cst_25 = arith.constant 0.000000e+00 : f32
      %42 = vector.broadcast %cst_25 : f32 to vector<128x1xf32>
      %43 = arith.subf %42, %19 : vector<128x1xf32>
      %44 = math.exp %43 : vector<128x1xf32>
      %45 = arith.mulf %41, %44 : vector<128x1xf32>
      %46 = arith.addf %39, %45 : vector<128x1xf32>
      %c0_26 = arith.constant 0 : index
      %c0_27 = arith.constant 0 : index
      %47 = vector.load %arg10[%c0_26, %c0_27] : memref<128x1xf32, #tpu.memory_space<vmem>>, vector<128x1xf32>
      tpu.vector_store %arg10[%c0_26, %c0_27], %46 {strides = array<i32>} : memref<128x1xf32, #tpu.memory_space<vmem>>, vector<128x1xf32>,
      %cst_28 = arith.constant dense<0.000000e+00> : vector<128xf32>
      %48 = vector.multi_reduction <add>, %37, %cst_28 [0] : vector<128x128xf32> to vector<128xf32>
      %49 = vector.shape_cast %48 : vector<128xf32> to vector<1x128xf32>
      %cst_29 = arith.constant 0.000000e+00 : f32
      %50 = vector.broadcast %cst_29 : f32 to vector<1x128xf32>
      %51 = arith.subf %50, %23 : vector<1x128xf32>
      %52 = math.exp %51 : vector<1x128xf32>
      %53 = arith.mulf %49, %52 : vector<1x128xf32>
      %c0_30 = arith.constant 0 : index
      %c0_31 = arith.constant 0 : index
      %c0_32 = arith.constant 0 : index
      %54 = vector.load %arg8[%c0_30, %c0_31, %c0_32] : memref<1x1x128xf32, #tpu.memory_space<vmem>>, vector<1x1x128xf32>
      %55 = vector.shape_cast %54 : vector<1x1x128xf32> to vector<1x128xf32>
      %56 = vector.shape_cast %53 : vector<1x128xf32> to vector<1x1x128xf32>
      tpu.vector_store %arg8[%c0_30, %c0_31, %c0_32], %56 {strides = array<i32>} : memref<1x1x128xf32, #tpu.memory_space<vmem>>, vector<1x1x128xf32>,
    } else {
    }
    %true = arith.constant true
    %30 = arith.xori %27, %true : i1
    %31 = arith.extui %30 : i1 to i32
    %c0_i32_17 = arith.constant 0 : i32
    %32 = arith.cmpi ne, %31, %c0_i32_17 : i32
    scf.if %32 {
      %c0_22 = arith.constant 0 : index
      %c0_23 = arith.constant 0 : index
      %37 = vector.load %arg10[%c0_22, %c0_23] : memref<128x1xf32, #tpu.memory_space<vmem>>, vector<128x1xf32>
      %38 = arith.mulf %37, %21 : vector<128x1xf32>
      %39 = vector.broadcast %19 : vector<128x1xf32> to vector<128x128xf32>
      %40 = arith.subf %8, %39 : vector<128x128xf32>
      %41 = math.exp %40 : vector<128x128xf32>
      %cst_24 = arith.constant dense<0.000000e+00> : vector<128xf32>
      %42 = vector.multi_reduction <add>, %41, %cst_24 [1] : vector<128x128xf32> to vector<128xf32>
      %43 = vector.shape_cast %42 : vector<128xf32> to vector<128x1xf32>
      %44 = arith.addf %38, %43 : vector<128x1xf32>
      %c0_25 = arith.constant 0 : index
      %c0_26 = arith.constant 0 : index
      %45 = vector.load %arg10[%c0_25, %c0_26] : memref<128x1xf32, #tpu.memory_space<vmem>>, vector<128x1xf32>
      tpu.vector_store %arg10[%c0_25, %c0_26], %44 {strides = array<i32>} : memref<128x1xf32, #tpu.memory_space<vmem>>, vector<128x1xf32>,
      %46 = vector.broadcast %23 : vector<1x128xf32> to vector<128x128xf32>
      %47 = arith.subf %8, %46 : vector<128x128xf32>
      %48 = math.exp %47 : vector<128x128xf32>
      %cst_27 = arith.constant dense<0.000000e+00> : vector<128xf32>
      %49 = vector.multi_reduction <add>, %48, %cst_27 [0] : vector<128x128xf32> to vector<128xf32>
      %50 = vector.shape_cast %49 : vector<128xf32> to vector<1x128xf32>
      %c0_28 = arith.constant 0 : index
      %c0_29 = arith.constant 0 : index
      %c0_30 = arith.constant 0 : index
      %51 = vector.load %arg8[%c0_28, %c0_29, %c0_30] : memref<1x1x128xf32, #tpu.memory_space<vmem>>, vector<1x1x128xf32>
      %52 = vector.shape_cast %51 : vector<1x1x128xf32> to vector<1x128xf32>
      %53 = vector.shape_cast %50 : vector<1x128xf32> to vector<1x1x128xf32>
      tpu.vector_store %arg8[%c0_28, %c0_29, %c0_30], %53 {strides = array<i32>} : memref<1x1x128xf32, #tpu.memory_space<vmem>>, vector<1x1x128xf32>,
    } else {
    }
    %c0_18 = arith.constant 0 : index
    %c0_19 = arith.constant 0 : index
    %33 = vector.load %arg9[%c0_18, %c0_19] : memref<128x1xf32, #tpu.memory_space<vmem>>, vector<128x1xf32>
    tpu.vector_store %arg9[%c0_18, %c0_19], %19 {strides = array<i32>} : memref<128x1xf32, #tpu.memory_space<vmem>>, vector<128x1xf32>,
    %c1_i32_20 = arith.constant 1 : i32
    %34 = arith.cmpi eq, %arg1, %c1_i32_20 : i32
    %35 = arith.extui %34 : i1 to i32
    %c0_i32_21 = arith.constant 0 : i32
    %36 = arith.cmpi ne, %35, %c0_i32_21 : i32
    scf.if %36 {
      %c0_22 = arith.constant 0 : index
      %c0_23 = arith.constant 0 : index
      %37 = vector.load %arg9[%c0_22, %c0_23] : memref<128x1xf32, #tpu.memory_space<vmem>>, vector<128x1xf32>
      %c0_24 = arith.constant 0 : index
      %c0_25 = arith.constant 0 : index
      %38 = vector.load %arg10[%c0_24, %c0_25] : memref<128x1xf32, #tpu.memory_space<vmem>>, vector<128x1xf32>
      %39 = math.log %38 : vector<128x1xf32>
      %40 = arith.addf %37, %39 : vector<128x1xf32>
      %c0_26 = arith.constant 0 : index
      %c0_27 = arith.constant 0 : index
      %41 = vector.load %arg5[%c0_26, %c0_27] : memref<128x1xf32, #tpu.memory_space<vmem>>, vector<128x1xf32>
      tpu.vector_store %arg5[%c0_26, %c0_27], %40 {strides = array<i32>} : memref<128x1xf32, #tpu.memory_space<vmem>>, vector<128x1xf32>,
    } else {
    }
    return
  }
  func.func @transform_0(%arg0: i32, %arg1: i32) -> i32 {
    %c0_i32 = arith.constant 0 : i32
    %c0_i32_0 = arith.constant 0 : i32
    return %c0_i32 : i32
  }
  func.func @transform_1(%arg0: i32, %arg1: i32) -> (i32, i32) {
    %c0_i32 = arith.constant 0 : i32
    %c0_i32_0 = arith.constant 0 : i32
    return %arg0, %c0_i32 : i32, i32
  }
  func.func @transform_2(%arg0: i32, %arg1: i32) -> (i32, i32) {
    %c0_i32 = arith.constant 0 : i32
    %c0_i32_0 = arith.constant 0 : i32
    return %arg1, %c0_i32 : i32, i32
  }
  func.func @transform_3(%arg0: i32, %arg1: i32) -> (i32, i32) {
    %c0_i32 = arith.constant 0 : i32
    %c0_i32_0 = arith.constant 0 : i32
    return %arg0, %c0_i32 : i32, i32
  }
  func.func @transform_4(%arg0: i32, %arg1: i32) -> (i32, i32) {
    %c0_i32 = arith.constant 0 : i32
    %c0_i32_0 = arith.constant 0 : i32
    return %arg0, %c0_i32 : i32, i32
  }
  func.func @transform_5(%arg0: i32, %arg1: i32) -> (i32, i32, i32) {
    %c0_i32 = arith.constant 0 : i32
    %c0_i32_0 = arith.constant 0 : i32
    return %arg0, %c0_i32, %arg1 : i32, i32, i32
  }
  func.func @transform_6(%arg0: i32, %arg1: i32) -> (i32, i32, i32) {
    %c0_i32 = arith.constant 0 : i32
    %c0_i32_0 = arith.constant 0 : i32
    return %arg0, %c0_i32, %arg1 : i32, i32, i32
  }
}

</mosaic_0001>

<llo_original>
// kernel: tpu_custom_call.1
$region0: #{tpu_custom_call.1}
  #allocation0 [shape = 'u32[]', space=smem, size = 0x4, offset = 0x4, fixed_abs, tag = 'smem constant byte address 0x4 - core index']
  #allocation1 [shape = 'u32[144,128]{1,0:T(1,128)}', space=vmem, size = 0x12000, scoped, tag = 'internal scratch']
  #allocation2 [shape = 'f32[128,1]{1,0:T(8,128)}', space=vmem, size = 0x10000, scoped, tag = 'scratch operand']
  #allocation3 [shape = 'f32[128,1]{1,0:T(8,128)}', space=vmem, size = 0x10000, scoped, tag = 'scratch operand']
  #allocation4 [shape = 'f32[1]{0:T(128)S(6)}', space=smem, size = 0x200, scoped, tag = 'scoped memory for tpu_custom_call.1']
  %s0 = inlined_call_operand.<no memory space> [shape: f32[1], index: 0, kind: input, shape index: {}]
  %s1 = inlined_call_operand.vmem [shape: f32[256,64], index: 1, kind: input, shape index: {}]
  %s2 = inlined_call_operand.vmem [shape: f32[256,64], index: 2, kind: input, shape index: {}]
  %s3 = inlined_call_operand.vmem [shape: f32[256,1], index: 3, kind: output, shape index: {0}]
  %s4 = inlined_call_operand.vmem [shape: f32[256,1], index: 4, kind: output, shape index: {1}]
  %s5 = inlined_call_operand.hbm [shape: f32[2,1,256], index: 5, kind: output, shape index: {2}]
  %s6 = inlined_call_operand.hbm [shape: f32[2,1,256], index: 6, kind: output, shape index: {3}]
  %7 = xla_tuple %s3, %s4, %s5, %s6
  %s8 = sld [smem:[#allocation0]]
  $region89: #{tpu_custom_call.1} parent=0
    _
  %s10 = ssub.s32 1, %s8
  %s11 = scalar_select 0, %s10, %s8
  %12 = sst [smem:[#allocation4]] %s0
  $region1: #{tpu_custom_call.1} parent=0
    #allocation5 [shape = 'u8[1024]{0}', space=vmem, size = 0x400, scoped, tag = 'output window, operand 2']
    #allocation6 [shape = 's32[2]{0}', space=sflag, size = 0x8, scoped, tag = 'scoped memory for tpu_custom_call.1']
    #allocation7 [shape = 'u8[1024]{0}', space=vmem, size = 0x400, scoped, tag = 'output window, operand 3']
    #allocation8 [shape = 's32[2]{0}', space=sflag, size = 0x8, scoped, tag = 'scoped memory for tpu_custom_call.1']
    %13 = vsyncpa [#allocation6], 0
    %s14 = scalar_lea.sflag [#allocation6], 1
    %15 = vsyncpa %s14, 0
    %16 = vsyncpa [#allocation8], 0
    %s17 = scalar_lea.sflag [#allocation8], 1
    %18 = vsyncpa %s17, 0
    loop: start=0, step=1, limit=6
    $region2: #{tpu_custom_call.1} parent=1 // loop_pre_header
      _
    $region3: #{tpu_custom_call.1} parent=1 // loop_header
      %s20 = sphi 0, %s24
      %p21 = scmp.ge.s32.totalorder %s20, 6
      %s27 = sphi 0, %s39
      %s28 = sphi 0, %s35
      %s29 = sphi 0, %s27
      %s30 = sphi 0, %s28
      %s31 = sphi 0, %s29
      %s32 = sphi 0, %s30
      %s40 = sphi 0, %s40
      %s42 = sphi 0, %s40
      %s43 = sphi 0, %s42
      %s57 = sphi 0, %s43
      %s63 = sphi 0, %s65
      %s66 = sphi 0, %s63
      %s67 = sphi 0, %s66
      %s83 = sphi 0, %s67
      %s89 = sphi 0, %s91
      %s92 = sphi 0, %s89
      %s93 = sphi 0, %s92
      %s109 = sphi 0, %s93
      %s115 = sphi 0, %s117
      %s118 = sphi 0, %s115
      %s119 = sphi 0, %s118
      %s135 = sphi 0, %s119
      %s141 = sphi 0, %s143
      %s144 = sphi 0, %s141
      %s145 = sphi 0, %s144
      %s161 = sphi 0, %s145
      %s169 = sphi 0, %s171
      %s172 = sphi 0, %s169
      %s173 = sphi 0, %s172
      %s189 = sphi 0, %s173
      %s197 = sphi 0, %s199
      %s200 = sphi 0, %s197
      %s201 = sphi 0, %s200
      %s217 = sphi 0, %s201
    $region4: #{tpu_custom_call.1} parent=1 // loop_header_branch
      %23 = sbr.rel (%p21) target = $region8
    $region5: #{tpu_custom_call.1} parent=1 // loop_body
      %s25 = ssub.s32 %s20, 1
      %s26 = ssub.s32 %s20, 2
      %s33 = sadd.s32 1, %s28
      %p34 = scmp.ge.s32.totalorder %s33, 2
      %s35 = scalar_select %p34, 0, %s33
      %s36 = sadd.s32 1, %s27
      %s37 = scalar_select %p34, %s36, %s27
      %p38 = scmp.ge.s32.totalorder %s37, 2
      %s39 = scalar_select %p38, 0, %s37
      %s41 = sadd.s32 %s40, 1
      %p44 = scmp.eq.s32.totalorder %s20, 3
      %p45 = scmp.ne.s32.totalorder %s40, %s42
      %p46 = scmp.eq.s32.totalorder %s20, 0
      %p47 = por %p45, %p46
      %p48 = scmp.ne.s32.totalorder %s40, %s42
      %p49 = scmp.eq.s32.totalorder %s25, 3
      %p50 = por %p48, %p49
      %p51 = scmp.ne.s32.totalorder %s42, %s43
      %p52 = scmp.eq.s32.totalorder %s25, 0
      %p53 = por %p51, %p52
      %p54 = scmp.ne.s32.totalorder %s42, %s43
      %p55 = scmp.eq.s32.totalorder %s26, 3
      %p56 = por %p54, %p55
      %p58 = scmp.ne.s32.totalorder %s43, %s57
      %p59 = scmp.eq.s32.totalorder %s26, 0
      %p60 = por %p58, %p59
      %s61 = ssub.s32 %s27, %s39
      %p62 = scmp.eq.s32.totalorder %s61, 0
      %s64 = sadd.s32 %s63, 1
      %s65 = scalar_select %p62, %s63, %s64
      %p68 = pneg %p62
      %p69 = scmp.eq.s32.totalorder %s20, 3
      %p70 = por %p68, %p69
      %p71 = scmp.ne.s32.totalorder %s63, %s66
      %p72 = scmp.eq.s32.totalorder %s20, 0
      %p73 = por %p71, %p72
      %p74 = scmp.ne.s32.totalorder %s63, %s66
      %p75 = scmp.eq.s32.totalorder %s25, 3
      %p76 = por %p74, %p75
      %p77 = scmp.ne.s32.totalorder %s66, %s67
      %p78 = scmp.eq.s32.totalorder %s25, 0
      %p79 = por %p77, %p78
      %p80 = scmp.ne.s32.totalorder %s66, %s67
      %p81 = scmp.eq.s32.totalorder %s26, 3
      %p82 = por %p80, %p81
      %p84 = scmp.ne.s32.totalorder %s67, %s83
      %p85 = scmp.eq.s32.totalorder %s26, 0
      %p86 = por %p84, %p85
      %s87 = ssub.s32 %s28, %s35
      %p88 = scmp.eq.s32.totalorder %s87, 0
      %s90 = sadd.s32 %s89, 1
      %s91 = scalar_select %p88, %s89, %s90
      %p94 = pneg %p88
      %p95 = scmp.eq.s32.totalorder %s20, 3
      %p96 = por %p94, %p95
      %p97 = scmp.ne.s32.totalorder %s89, %s92
      %p98 = scmp.eq.s32.totalorder %s20, 0
      %p99 = por %p97, %p98
      %p100 = scmp.ne.s32.totalorder %s89, %s92
      %p101 = scmp.eq.s32.totalorder %s25, 3
      %p102 = por %p100, %p101
      %p103 = scmp.ne.s32.totalorder %s92, %s93
      %p104 = scmp.eq.s32.totalorder %s25, 0
      %p105 = por %p103, %p104
      %p106 = scmp.ne.s32.totalorder %s92, %s93
      %p107 = scmp.eq.s32.totalorder %s26, 3
      %p108 = por %p106, %p107
      %p110 = scmp.ne.s32.totalorder %s93, %s109
      %p111 = scmp.eq.s32.totalorder %s26, 0
      %p112 = por %p110, %p111
      %s113 = ssub.s32 %s27, %s39
      %p114 = scmp.eq.s32.totalorder %s113, 0
      %s116 = sadd.s32 %s115, 1
      %s117 = scalar_select %p114, %s115, %s116
      %p120 = pneg %p114
      %p121 = scmp.eq.s32.totalorder %s20, 3
      %p122 = por %p120, %p121
      %p123 = scmp.ne.s32.totalorder %s115, %s118
      %p124 = scmp.eq.s32.totalorder %s20, 0
      %p125 = por %p123, %p124
      %p126 = scmp.ne.s32.totalorder %s115, %s118
      %p127 = scmp.eq.s32.totalorder %s25, 3
      %p128 = por %p126, %p127
      %p129 = scmp.ne.s32.totalorder %s118, %s119
      %p130 = scmp.eq.s32.totalorder %s25, 0
      %p131 = por %p129, %p130
      %p132 = scmp.ne.s32.totalorder %s118, %s119
      %p133 = scmp.eq.s32.totalorder %s26, 3
      %p134 = por %p132, %p133
      %p136 = scmp.ne.s32.totalorder %s119, %s135
      %p137 = scmp.eq.s32.totalorder %s26, 0
      %p138 = por %p136, %p137
      %s139 = ssub.s32 %s27, %s39
      %p140 = scmp.eq.s32.totalorder %s139, 0
      %s142 = sadd.s32 %s141, 1
      %s143 = scalar_select %p140, %s141, %s142
      %p146 = pneg %p140
      %p147 = scmp.eq.s32.totalorder %s20, 3
      %p148 = por %p146, %p147
      %p149 = scmp.ne.s32.totalorder %s141, %s144
      %p150 = scmp.eq.s32.totalorder %s20, 0
      %p151 = por %p149, %p150
      %p152 = scmp.ne.s32.totalorder %s141, %s144
      %p153 = scmp.eq.s32.totalorder %s25, 3
      %p154 = por %p152, %p153
      %p155 = scmp.ne.s32.totalorder %s144, %s145
      %p156 = scmp.eq.s32.totalorder %s25, 0
      %p157 = por %p155, %p156
      %p158 = scmp.ne.s32.totalorder %s144, %s145
      %p159 = scmp.eq.s32.totalorder %s26, 3
      %p160 = por %p158, %p159
      %p162 = scmp.ne.s32.totalorder %s145, %s161
      %p163 = scmp.eq.s32.totalorder %s26, 0
      %p164 = por %p162, %p163
      %s165 = ssub.s32 %s27, %s39
      %s166 = ssub.s32 %s28, %s35
      %s167 = sor.u32 %s165, %s166
      %p168 = scmp.eq.s32.totalorder %s167, 0
      %s170 = sadd.s32 %s169, 1
      %s171 = scalar_select %p168, %s169, %s170
      %p174 = pneg %p168
      %p175 = scmp.eq.s32.totalorder %s20, 3
      %p176 = por %p174, %p175
      %p177 = scmp.ne.s32.totalorder %s169, %s172
      %p178 = scmp.eq.s32.totalorder %s20, 0
      %p179 = por %p177, %p178
      %p180 = scmp.ne.s32.totalorder %s169, %s172
      %p181 = scmp.eq.s32.totalorder %s25, 3
      %p182 = por %p180, %p181
      %p183 = scmp.ne.s32.totalorder %s172, %s173
      %p184 = scmp.eq.s32.totalorder %s25, 0
      %p185 = por %p183, %p184
      %p186 = scmp.ne.s32.totalorder %s172, %s173
      %p187 = scmp.eq.s32.totalorder %s26, 3
      %p188 = por %p186, %p187
      %p190 = scmp.ne.s32.totalorder %s173, %s189
      %p191 = scmp.eq.s32.totalorder %s26, 0
      %p192 = por %p190, %p191
      %s193 = ssub.s32 %s27, %s39
      %s194 = ssub.s32 %s28, %s35
      %s195 = sor.u32 %s193, %s194
      %p196 = scmp.eq.s32.totalorder %s195, 0
      %s198 = sadd.s32 %s197, 1
      %s199 = scalar_select %p196, %s197, %s198
      %p202 = pneg %p196
      %p203 = scmp.eq.s32.totalorder %s20, 3
      %p204 = por %p202, %p203
      %p205 = scmp.ne.s32.totalorder %s197, %s200
      %p206 = scmp.eq.s32.totalorder %s20, 0
      %p207 = por %p205, %p206
      %p208 = scmp.ne.s32.totalorder %s197, %s200
      %p209 = scmp.eq.s32.totalorder %s25, 3
      %p210 = por %p208, %p209
      %p211 = scmp.ne.s32.totalorder %s200, %s201
      %p212 = scmp.eq.s32.totalorder %s25, 0
      %p213 = por %p211, %p212
      %p214 = scmp.ne.s32.totalorder %s200, %s201
      %p215 = scmp.eq.s32.totalorder %s26, 3
      %p216 = por %p214, %p215
      %p218 = scmp.ne.s32.totalorder %s201, %s217
      %p219 = scmp.eq.s32.totalorder %s26, 0
      %p220 = por %p218, %p219
      %p221 = scmp.le.s32.totalorder 1, %s20
      %p222 = scmp.lt.s32.totalorder %s20, 5
      %p223 = pnand %p221, %p222
      %p224 = pneg %p223
      // Predicated region
      $region9: #{tpu_custom_call.1} parent=5 // pred_check
        _
      $region10: #{tpu_custom_call.1} parent=5 // pred_check_branch
        %226 = sbr.rel (%p223) target = $region12
      $region11: #{tpu_custom_call.1} parent=5 // pred_region
        %s227 = ssub.s32 %s20, 1
        // Predicated region
        $region13: #{tpu_custom_call.1} parent=11 // pred_check
          %p228 = pneg %p53
        $region14: #{tpu_custom_call.1} parent=11 // pred_check_branch
          %230 = sbr.rel (%p228) target = $region16
        $region15: #{tpu_custom_call.1} parent=11 // pred_region
          _
        $region16: #{tpu_custom_call.1} parent=11 // pred_fallthru
          _
      $region12: #{tpu_custom_call.1} parent=5 // pred_fallthru
        _
      %p231 = scmp.lt.s32.totalorder %s20, 4
      // Predicated region
      $region17: #{tpu_custom_call.1} parent=5 // pred_check
        %p232 = pneg %p231
      $region18: #{tpu_custom_call.1} parent=5 // pred_check_branch
        %234 = sbr.rel (%p232) target = $region20
      $region19: #{tpu_custom_call.1} parent=5 // pred_region
        // Predicated region
        $region21: #{tpu_custom_call.1} parent=19 // pred_check
          %p235 = pneg %p73
        $region22: #{tpu_custom_call.1} parent=19 // pred_check_branch
          %237 = sbr.rel (%p235) target = $region24
        $region23: #{tpu_custom_call.1} parent=19 // pred_region
          %s238 = smul.u32 16, %s27
          %p239 = scmp.lt.s32.totalorder %s238, 31
          %s240 = scalar_select %p239, %s238, 31
          %s241 = smul.addr %s240, 8
          %s242 = scalar_lea.vmem %s1, %s241
          %s243 = smul.u32 16, %s27
        $region24: #{tpu_custom_call.1} parent=19 // pred_fallthru
          _
        // Predicated region
        $region25: #{tpu_custom_call.1} parent=19 // pred_check
          %p244 = pneg %p99
        $region26: #{tpu_custom_call.1} parent=19 // pred_check_branch
          %246 = sbr.rel (%p244) target = $region28
        $region27: #{tpu_custom_call.1} parent=19 // pred_region
          %s247 = smul.u32 16, %s28
          %p248 = scmp.lt.s32.totalorder %s247, 31
          %s249 = scalar_select %p248, %s247, 31
          %s250 = smul.addr %s249, 8
          %s251 = scalar_lea.vmem %s2, %s250
          %s252 = smul.u32 16, %s28
        $region28: #{tpu_custom_call.1} parent=19 // pred_fallthru
          _
      $region20: #{tpu_custom_call.1} parent=5 // pred_fallthru
        _
      %p253 = scmp.le.s32.totalorder 1, %s20
      %p254 = scmp.lt.s32.totalorder %s20, 5
      %p255 = pnand %p253, %p254
      %p256 = pneg %p255
      // Predicated region
      $region29: #{tpu_custom_call.1} parent=5 // pred_check
        _
      $region30: #{tpu_custom_call.1} parent=5 // pred_check_branch
        %258 = sbr.rel (%p255) target = $region32
      $region31: #{tpu_custom_call.1} parent=5 // pred_region
        %s259 = ssub.s32 %s20, 1
        %p260 = pneg %p53
        %p261 = pneg %p50
        %s262 = smul.u32 16, %s29
        %p263 = scmp.lt.s32.totalorder %s262, 31
        %s264 = scalar_select %p263, %s262, 31
        %s265 = smul.addr %s264, 8
        %s266 = scalar_lea.vmem %s1, %s265
        %p267 = pneg %p79
        %p268 = pneg %p76
        %s269 = smul.u32 16, %s30
        %p270 = scmp.lt.s32.totalorder %s269, 31
        %s271 = scalar_select %p270, %s269, 31
        %s272 = smul.addr %s271, 8
        %s273 = scalar_lea.vmem %s2, %s272
        %p274 = pneg %p105
        %p275 = pneg %p102
        %p276 = pneg %p131
        %p277 = pneg %p128
        %s278 = smul.u32 16, %s29
        %p279 = scmp.lt.s32.totalorder %s278, 31
        %s280 = scalar_select %p279, %s278, 31
        %s281 = smul.addr %s280, 8
        %s282 = scalar_lea.vmem %s3, %s281
        %p283 = pneg %p157
        %p284 = pneg %p154
        %s285 = smul.u32 16, %s29
        %p286 = scmp.lt.s32.totalorder %s285, 31
        %s287 = scalar_select %p286, %s285, 31
        %s288 = smul.addr %s287, 8
        %s289 = scalar_lea.vmem %s4, %s288
        %p290 = pneg %p185
        %p291 = pneg %p182
        %s292 = sand.u32 %s172, 1
        %s293 = scalar_lea.sflag [#allocation6], %s292
        %s294 = sand.u32 %s172, 1
        %s295 = scalar_lea.vmem [#allocation5], %s294
        %p296 = pneg %p213
        %p297 = pneg %p210
        %s298 = sand.u32 %s200, 1
        %s299 = scalar_lea.sflag [#allocation8], %s298
        %s300 = sand.u32 %s200, 1
        %s301 = scalar_lea.vmem [#allocation7], %s300
        %s302 = smul.u32 16, %s29
        %p303 = scmp.lt.s32.totalorder %s302, 31
        %s304 = scalar_select %p303, %s302, 31
        %s305 = smul.addr %s304, 8
        %s306 = scalar_lea.vmem %s1, %s305
        %s307 = smul.u32 16, %s29
        %s308 = smul.u32 16, %s30
        %p309 = scmp.lt.s32.totalorder %s308, 31
        %s310 = scalar_select %p309, %s308, 31
        %s311 = smul.addr %s310, 8
        %s312 = scalar_lea.vmem %s2, %s311
        %s313 = smul.u32 16, %s30
        %s314 = smul.u32 16, %s29
        %p315 = scmp.lt.s32.totalorder %s314, 31
        %s316 = scalar_select %p315, %s314, 31
        %s317 = smul.addr %s316, 8
        %s318 = scalar_lea.vmem %s3, %s317
        %s319 = smul.u32 16, %s29
        %s320 = smul.u32 16, %s29
        %p321 = scmp.lt.s32.totalorder %s320, 31
        %s322 = scalar_select %p321, %s320, 31
        %s323 = smul.addr %s322, 8
        %s324 = scalar_lea.vmem %s4, %s323
        %s325 = smul.u32 16, %s29
        %s326 = sld [smem:[#allocation4]]
        %p327 = scmp.eq.s32.totalorder %s30, 0
        // Predicated region
        $region33: #{tpu_custom_call.1} parent=31 // pred_check
          %p328 = pneg %p327
        $region34: #{tpu_custom_call.1} parent=31 // pred_check_branch
          %330 = sbr.rel (%p328) target = $region36
        $region35: #{tpu_custom_call.1} parent=31 // pred_region
          %vm331 = vcmask 7168
          %332 = vst.msk [vmem:[#allocation2] sm:$0xff] %vm331, -inf
          %333 = vst.msk [vmem:[#allocation2 + $0x8] sm:$0xff] %vm331, -inf
          %334 = vst.msk [vmem:[#allocation2 + $0x10] sm:$0xff] %vm331, -inf
          %335 = vst.msk [vmem:[#allocation2 + $0x18] sm:$0xff] %vm331, -inf
          %336 = vst.msk [vmem:[#allocation2 + $0x20] sm:$0xff] %vm331, -inf
          %337 = vst.msk [vmem:[#allocation2 + $0x28] sm:$0xff] %vm331, -inf
          %338 = vst.msk [vmem:[#allocation2 + $0x30] sm:$0xff] %vm331, -inf
          %339 = vst.msk [vmem:[#allocation2 + $0x38] sm:$0xff] %vm331, -inf
          %340 = vst.msk [vmem:[#allocation2 + $0x40] sm:$0xff] %vm331, -inf
          %341 = vst.msk [vmem:[#allocation2 + $0x48] sm:$0xff] %vm331, -inf
          %342 = vst.msk [vmem:[#allocation2 + $0x50] sm:$0xff] %vm331, -inf
          %343 = vst.msk [vmem:[#allocation2 + $0x58] sm:$0xff] %vm331, -inf
          %344 = vst.msk [vmem:[#allocation2 + $0x60] sm:$0xff] %vm331, -inf
          %345 = vst.msk [vmem:[#allocation2 + $0x68] sm:$0xff] %vm331, -inf
          %346 = vst.msk [vmem:[#allocation2 + $0x70] sm:$0xff] %vm331, -inf
          %347 = vst.msk [vmem:[#allocation2 + $0x78] sm:$0xff] %vm331, -inf
          %348 = vst.msk [vmem:[#allocation3] sm:$0xff] %vm331, 0.0
          %349 = vst.msk [vmem:[#allocation3 + $0x8] sm:$0xff] %vm331, 0.0
          %350 = vst.msk [vmem:[#allocation3 + $0x10] sm:$0xff] %vm331, 0.0
          %351 = vst.msk [vmem:[#allocation3 + $0x18] sm:$0xff] %vm331, 0.0
          %352 = vst.msk [vmem:[#allocation3 + $0x20] sm:$0xff] %vm331, 0.0
          %353 = vst.msk [vmem:[#allocation3 + $0x28] sm:$0xff] %vm331, 0.0
          %354 = vst.msk [vmem:[#allocation3 + $0x30] sm:$0xff] %vm331, 0.0
          %355 = vst.msk [vmem:[#allocation3 + $0x38] sm:$0xff] %vm331, 0.0
          %356 = vst.msk [vmem:[#allocation3 + $0x40] sm:$0xff] %vm331, 0.0
          %357 = vst.msk [vmem:[#allocation3 + $0x48] sm:$0xff] %vm331, 0.0
          %358 = vst.msk [vmem:[#allocation3 + $0x50] sm:$0xff] %vm331, 0.0
          %359 = vst.msk [vmem:[#allocation3 + $0x58] sm:$0xff] %vm331, 0.0
          %360 = vst.msk [vmem:[#allocation3 + $0x60] sm:$0xff] %vm331, 0.0
          %361 = vst.msk [vmem:[#allocation3 + $0x68] sm:$0xff] %vm331, 0.0
          %362 = vst.msk [vmem:[#allocation3 + $0x70] sm:$0xff] %vm331, 0.0
          %363 = vst.msk [vmem:[#allocation3 + $0x78] sm:$0xff] %vm331, 0.0
        $region36: #{tpu_custom_call.1} parent=31 // pred_fallthru
          _
        %v364 = vld [vmem:[%s306] sm:$0xff]
        %v365 = vld [vmem:[%s306 + $0x8] sm:$0xff]
        %v366 = vld [vmem:[%s306 + $0x10] sm:$0xff]
        %v367 = vld [vmem:[%s306 + $0x18] sm:$0xff]
        %v368 = vld [vmem:[%s306 + $0x20] sm:$0xff]
        %v369 = vld [vmem:[%s306 + $0x28] sm:$0xff]
        %v370 = vld [vmem:[%s306 + $0x30] sm:$0xff]
        %v371 = vld [vmem:[%s306 + $0x38] sm:$0xff]
        %v372 = vld [vmem:[%s306 + $0x40] sm:$0xff]
        %v373 = vld [vmem:[%s306 + $0x48] sm:$0xff]
        %v374 = vld [vmem:[%s306 + $0x50] sm:$0xff]
        %v375 = vld [vmem:[%s306 + $0x58] sm:$0xff]
        %v376 = vld [vmem:[%s306 + $0x60] sm:$0xff]
        %v377 = vld [vmem:[%s306 + $0x68] sm:$0xff]
        %v378 = vld [vmem:[%s306 + $0x70] sm:$0xff]
        %v379 = vld [vmem:[%s306 + $0x78] sm:$0xff]
        %v380 = vld [vmem:[%s312] sm:$0xff]
        %v381 = vld [vmem:[%s312 + $0x8] sm:$0xff]
        %v382 = vld [vmem:[%s312 + $0x10] sm:$0xff]
        %v383 = vld [vmem:[%s312 + $0x18] sm:$0xff]
        %v384 = vld [vmem:[%s312 + $0x20] sm:$0xff]
        %v385 = vld [vmem:[%s312 + $0x28] sm:$0xff]
        %v386 = vld [vmem:[%s312 + $0x30] sm:$0xff]
        %v387 = vld [vmem:[%s312 + $0x38] sm:$0xff]
        %v388 = vld [vmem:[%s312 + $0x40] sm:$0xff]
        %v389 = vld [vmem:[%s312 + $0x48] sm:$0xff]
        %v390 = vld [vmem:[%s312 + $0x50] sm:$0xff]
        %v391 = vld [vmem:[%s312 + $0x58] sm:$0xff]
        %v392 = vld [vmem:[%s312 + $0x60] sm:$0xff]
        %v393 = vld [vmem:[%s312 + $0x68] sm:$0xff]
        %v394 = vld [vmem:[%s312 + $0x70] sm:$0xff]
        %v395 = vld [vmem:[%s312 + $0x78] sm:$0xff]
        %vm396 = vcmask 523264
        %v398 = vsel %vm396, %v364, 0
        %v401 = vsel %vm396, %v365, 0
        %v404 = vsel %vm396, %v366, 0
        %v407 = vsel %vm396, %v367, 0
        %v410 = vsel %vm396, %v368, 0
        %v413 = vsel %vm396, %v369, 0
        %v416 = vsel %vm396, %v370, 0
        %v419 = vsel %vm396, %v371, 0
        %v422 = vsel %vm396, %v372, 0
        %v425 = vsel %vm396, %v373, 0
        %v428 = vsel %vm396, %v374, 0
        %v431 = vsel %vm396, %v375, 0
        %v434 = vsel %vm396, %v376, 0
        %v437 = vsel %vm396, %v377, 0
        %v440 = vsel %vm396, %v378, 0
        %v443 = vsel %vm396, %v379, 0
        %v446 = vsel %vm396, %v380, 0
        %v449 = vsel %vm396, %v381, 0
        %v452 = vsel %vm396, %v382, 0
        %v455 = vsel %vm396, %v383, 0
        %v458 = vsel %vm396, %v384, 0
        %v461 = vsel %vm396, %v385, 0
        %v464 = vsel %vm396, %v386, 0
        %v467 = vsel %vm396, %v387, 0
        %v470 = vsel %vm396, %v388, 0
        %v473 = vsel %vm396, %v389, 0
        %v476 = vsel %vm396, %v390, 0
        %v479 = vsel %vm396, %v391, 0
        %v482 = vsel %vm396, %v392, 0
        %v485 = vsel %vm396, %v393, 0
        %v488 = vsel %vm396, %v394, 0
        %v491 = vsel %vm396, %v395, 0
        %493 = vmatprep.subr.mxu0 0.0
        %494 = vmatpush1.xpose.msra.mxu0 %v491
        %495 = vmatprep.subr.mxu0 0.0
        %496 = vmatpush1.xpose.msra.mxu0 %v488
        %497 = vmatprep.subr.mxu0 0.0
        %498 = vmatpush1.xpose.msra.mxu0 %v485
        %499 = vmatprep.subr.mxu0 0.0
        %500 = vmatpush1.xpose.msra.mxu0 %v482
        %501 = vmatprep.subr.mxu0 0.0
        %502 = vmatpush1.xpose.msra.mxu0 %v479
        %503 = vmatprep.subr.mxu0 0.0
        %504 = vmatpush1.xpose.msra.mxu0 %v476
        %505 = vmatprep.subr.mxu0 0.0
        %506 = vmatpush1.xpose.msra.mxu0 %v473
        %507 = vmatprep.subr.mxu0 0.0
        %508 = vmatpush1.xpose.msra.mxu0 %v470
        %509 = vmatprep.subr.mxu0 0.0
        %510 = vmatpush1.xpose.msra.mxu0 %v467
        %511 = vmatprep.subr.mxu0 0.0
        %512 = vmatpush1.xpose.msra.mxu0 %v464
        %513 = vmatprep.subr.mxu0 0.0
        %514 = vmatpush1.xpose.msra.mxu0 %v461
        %515 = vmatprep.subr.mxu0 0.0
        %516 = vmatpush1.xpose.msra.mxu0 %v458
        %517 = vmatprep.subr.mxu0 0.0
        %518 = vmatpush1.xpose.msra.mxu0 %v455
        %519 = vmatprep.subr.mxu0 0.0
        %520 = vmatpush1.xpose.msra.mxu0 %v452
        %521 = vmatprep.subr.mxu0 0.0
        %522 = vmatpush1.xpose.msra.mxu0 %v449
        %523 = vmatprep.subr.mxu0 0.0
        %524 = vmatpush1.xpose.msra.mxu0 %v446
        %525 = vmatprep.subr.mxu0 0.0
        %526 = vmatpush2.xpose.msra.mxu0 0.0
        %527 = vmatprep.subr.mxu0 0.0
        %528 = vmatpush2.xpose.msra.mxu0 0.0
        %529 = vmatprep.subr.mxu0 0.0
        %530 = vmatpush2.xpose.msra.mxu0 0.0
        %531 = vmatprep.subr.mxu0 0.0
        %532 = vmatpush2.xpose.msra.mxu0 0.0
        %533 = vmatprep.subr.mxu0 0.0
        %534 = vmatpush2.xpose.msra.mxu0 0.0
        %535 = vmatprep.subr.mxu0 0.0
        %536 = vmatpush2.xpose.msra.mxu0 0.0
        %537 = vmatprep.subr.mxu0 0.0
        %538 = vmatpush2.xpose.msra.mxu0 0.0
        %539 = vmatprep.subr.mxu0 0.0
        %540 = vmatpush2.xpose.msra.mxu0 0.0
        %541 = vmatprep.subr.mxu0 0.0
        %542 = vmatpush2.xpose.msra.mxu0 0.0
        %543 = vmatprep.subr.mxu0 0.0
        %544 = vmatpush2.xpose.msra.mxu0 0.0
        %545 = vmatprep.subr.mxu0 0.0
        %546 = vmatpush2.xpose.msra.mxu0 0.0
        %547 = vmatprep.subr.mxu0 0.0
        %548 = vmatpush2.xpose.msra.mxu0 0.0
        %549 = vmatprep.subr.mxu0 0.0
        %550 = vmatpush2.xpose.msra.mxu0 0.0
        %551 = vmatprep.subr.mxu0 0.0
        %552 = vmatpush2.xpose.msra.mxu0 0.0
        %553 = vmatprep.subr.mxu0 0.0
        %554 = vmatpush2.xpose.msra.mxu0 0.0
        %555 = vmatprep.subr.mxu0 0.0
        %556 = vmatpush2.xpose.msra.mxu0 0.0
        %557 = vmatprep.mubr.f32.mxu0 0.0
        %558 = vmatmul.mubr.f32.gmra.mxu0 %v398
        %v559 = vpop.f32.mrf.mxu0
        %v560 = vadd.f32 0.0, %v559
        %v561 = vpop.f32.mrf.mxu0
        %562 = vmatprep.mubr.f32.mxu0 0.0
        %563 = vmatmul.mubr.f32.gmra.mxu0 %v401
        %v564 = vpop.f32.mrf.mxu0
        %v565 = vadd.f32 0.0, %v564
        %v566 = vpop.f32.mrf.mxu0
        %567 = vmatprep.mubr.f32.mxu0 0.0
        %568 = vmatmul.mubr.f32.gmra.mxu0 %v404
        %v569 = vpop.f32.mrf.mxu0
        %v570 = vadd.f32 0.0, %v569
        %v571 = vpop.f32.mrf.mxu0
        %572 = vmatprep.mubr.f32.mxu0 0.0
        %573 = vmatmul.mubr.f32.gmra.mxu0 %v407
        %v574 = vpop.f32.mrf.mxu0
        %v575 = vadd.f32 0.0, %v574
        %v576 = vpop.f32.mrf.mxu0
        %577 = vmatprep.mubr.f32.mxu0 0.0
        %578 = vmatmul.mubr.f32.gmra.mxu0 %v410
        %v579 = vpop.f32.mrf.mxu0
        %v580 = vadd.f32 0.0, %v579
        %v581 = vpop.f32.mrf.mxu0
        %582 = vmatprep.mubr.f32.mxu0 0.0
        %583 = vmatmul.mubr.f32.gmra.mxu0 %v413
        %v584 = vpop.f32.mrf.mxu0
        %v585 = vadd.f32 0.0, %v584
        %v586 = vpop.f32.mrf.mxu0
        %587 = vmatprep.mubr.f32.mxu0 0.0
        %588 = vmatmul.mubr.f32.gmra.mxu0 %v416
        %v589 = vpop.f32.mrf.mxu0
        %v590 = vadd.f32 0.0, %v589
        %v591 = vpop.f32.mrf.mxu0
        %592 = vmatprep.mubr.f32.mxu0 0.0
        %593 = vmatmul.mubr.f32.gmra.mxu0 %v419
        %v594 = vpop.f32.mrf.mxu0
        %v595 = vadd.f32 0.0, %v594
        %v596 = vpop.f32.mrf.mxu0
        %597 = vmatprep.mubr.f32.mxu0 0.0
        %598 = vmatmul.mubr.f32.gmra.mxu0 %v422
        %v599 = vpop.f32.mrf.mxu0
        %v600 = vadd.f32 0.0, %v599
        %v601 = vpop.f32.mrf.mxu0
        %602 = vmatprep.mubr.f32.mxu0 0.0
        %603 = vmatmul.mubr.f32.gmra.mxu0 %v425
        %v604 = vpop.f32.mrf.mxu0
        %v605 = vadd.f32 0.0, %v604
        %v606 = vpop.f32.mrf.mxu0
        %607 = vmatprep.mubr.f32.mxu0 0.0
        %608 = vmatmul.mubr.f32.gmra.mxu0 %v428
        %v609 = vpop.f32.mrf.mxu0
        %v610 = vadd.f32 0.0, %v609
        %v611 = vpop.f32.mrf.mxu0
        %612 = vmatprep.mubr.f32.mxu0 0.0
        %613 = vmatmul.mubr.f32.gmra.mxu0 %v431
        %v614 = vpop.f32.mrf.mxu0
        %v615 = vadd.f32 0.0, %v614
        %v616 = vpop.f32.mrf.mxu0
        %617 = vmatprep.mubr.f32.mxu0 0.0
        %618 = vmatmul.mubr.f32.gmra.mxu0 %v434
        %v619 = vpop.f32.mrf.mxu0
        %v620 = vadd.f32 0.0, %v619
        %v621 = vpop.f32.mrf.mxu0
        %622 = vmatprep.mubr.f32.mxu0 0.0
        %623 = vmatmul.mubr.f32.gmra.mxu0 %v437
        %v624 = vpop.f32.mrf.mxu0
        %v625 = vadd.f32 0.0, %v624
        %v626 = vpop.f32.mrf.mxu0
        %627 = vmatprep.mubr.f32.mxu0 0.0
        %628 = vmatmul.mubr.f32.gmra.mxu0 %v440
        %v629 = vpop.f32.mrf.mxu0
        %v630 = vadd.f32 0.0, %v629
        %v631 = vpop.f32.mrf.mxu0
        %632 = vmatprep.mubr.f32.mxu0 0.0
        %633 = vmatmul.mubr.f32.gmra.mxu0 %v443
        %v634 = vpop.f32.mrf.mxu0
        %v635 = vadd.f32 0.0, %v634
        %v636 = vpop.f32.mrf.mxu0
        %637 = vdwg.mxu0
        %v638 = vstv %s326
        %v639 = vmul.f32 %v560, %v638
        %v640 = vmul.f32 %v565, %v638
        %v641 = vmul.f32 %v570, %v638
        %v642 = vmul.f32 %v575, %v638
        %v643 = vmul.f32 %v580, %v638
        %v644 = vmul.f32 %v585, %v638
        %v645 = vmul.f32 %v590, %v638
        %v646 = vmul.f32 %v595, %v638
        %v647 = vmul.f32 %v600, %v638
        %v648 = vmul.f32 %v605, %v638
        %v649 = vmul.f32 %v610, %v638
        %v650 = vmul.f32 %v615, %v638
        %v651 = vmul.f32 %v620, %v638
        %v652 = vmul.f32 %v625, %v638
        %v653 = vmul.f32 %v630, %v638
        %v654 = vmul.f32 %v635, %v638
        %s655 = ssub.s32 %s30, %s29
        %p656 = scmp.ge.s32.totalorder %s655, 0
        %p657 = scmp.lt.s32.totalorder %s655, 1
        %p658 = pnand %p656, %p657
        %p659 = pneg %p658
        // Predicated region
        $region37: #{tpu_custom_call.1} parent=31 // pred_check
          _
        $region38: #{tpu_custom_call.1} parent=31 // pred_check_branch
          %661 = sbr.rel (%p658) target = $region40
        $region39: #{tpu_custom_call.1} parent=31 // pred_region
          %s662 = smul.u32 %s655, 128
          %s663 = scalar_lea.vmem %s306, %s662
          %v664 = vld [vmem:[%s663] sm:$0xff]
          %v665 = vld [vmem:[%s663 + $0x8] sm:$0xff]
          %v666 = vld [vmem:[%s663 + $0x10] sm:$0xff]
          %v667 = vld [vmem:[%s663 + $0x18] sm:$0xff]
          %v668 = vld [vmem:[%s663 + $0x20] sm:$0xff]
          %v669 = vld [vmem:[%s663 + $0x28] sm:$0xff]
          %v670 = vld [vmem:[%s663 + $0x30] sm:$0xff]
          %v671 = vld [vmem:[%s663 + $0x38] sm:$0xff]
          %v672 = vld [vmem:[%s663 + $0x40] sm:$0xff]
          %v673 = vld [vmem:[%s663 + $0x48] sm:$0xff]
          %v674 = vld [vmem:[%s663 + $0x50] sm:$0xff]
          %v675 = vld [vmem:[%s663 + $0x58] sm:$0xff]
          %v676 = vld [vmem:[%s663 + $0x60] sm:$0xff]
          %v677 = vld [vmem:[%s663 + $0x68] sm:$0xff]
          %v678 = vld [vmem:[%s663 + $0x70] sm:$0xff]
          %v679 = vld [vmem:[%s663 + $0x78] sm:$0xff]
          %v680 = vmul.f32 %v664, %v380
          %v681 = vmul.f32 %v665, %v381
          %v682 = vmul.f32 %v666, %v382
          %v683 = vmul.f32 %v667, %v383
          %v684 = vmul.f32 %v668, %v384
          %v685 = vmul.f32 %v669, %v385
          %v686 = vmul.f32 %v670, %v386
          %v687 = vmul.f32 %v671, %v387
          %v688 = vmul.f32 %v672, %v388
          %v689 = vmul.f32 %v673, %v389
          %v690 = vmul.f32 %v674, %v390
          %v691 = vmul.f32 %v675, %v391
          %v692 = vmul.f32 %v676, %v392
          %v693 = vmul.f32 %v677, %v393
          %v694 = vmul.f32 %v678, %v394
          %v695 = vmul.f32 %v679, %v395
          %v696 = vsel %vm396, %v680, 0.0
          %697 = vadd.xlane.f32.xlu0 %v696
          %v698 = vpop.xlane.xlu0 %697
          %v699 = vsel %vm396, %v681, 0.0
          %700 = vadd.xlane.f32.xlu0 %v699
          %v701 = vpop.xlane.xlu0 %700
          %v702 = vsel %vm396, %v682, 0.0
          %703 = vadd.xlane.f32.xlu0 %v702
          %v704 = vpop.xlane.xlu0 %703
          %v705 = vsel %vm396, %v683, 0.0
          %706 = vadd.xlane.f32.xlu0 %v705
          %v707 = vpop.xlane.xlu0 %706
          %v708 = vsel %vm396, %v684, 0.0
          %709 = vadd.xlane.f32.xlu0 %v708
          %v710 = vpop.xlane.xlu0 %709
          %v711 = vsel %vm396, %v685, 0.0
          %712 = vadd.xlane.f32.xlu0 %v711
          %v713 = vpop.xlane.xlu0 %712
          %v714 = vsel %vm396, %v686, 0.0
          %715 = vadd.xlane.f32.xlu0 %v714
          %v716 = vpop.xlane.xlu0 %715
          %v717 = vsel %vm396, %v687, 0.0
          %718 = vadd.xlane.f32.xlu0 %v717
          %v719 = vpop.xlane.xlu0 %718
          %v720 = vsel %vm396, %v688, 0.0
          %721 = vadd.xlane.f32.xlu0 %v720
          %v722 = vpop.xlane.xlu0 %721
          %v723 = vsel %vm396, %v689, 0.0
          %724 = vadd.xlane.f32.xlu0 %v723
          %v725 = vpop.xlane.xlu0 %724
          %v726 = vsel %vm396, %v690, 0.0
          %727 = vadd.xlane.f32.xlu0 %v726
          %v728 = vpop.xlane.xlu0 %727
          %v729 = vsel %vm396, %v691, 0.0
          %730 = vadd.xlane.f32.xlu0 %v729
          %v731 = vpop.xlane.xlu0 %730
          %v732 = vsel %vm396, %v692, 0.0
          %733 = vadd.xlane.f32.xlu0 %v732
          %v734 = vpop.xlane.xlu0 %733
          %v735 = vsel %vm396, %v693, 0.0
          %736 = vadd.xlane.f32.xlu0 %v735
          %v737 = vpop.xlane.xlu0 %736
          %v738 = vsel %vm396, %v694, 0.0
          %739 = vadd.xlane.f32.xlu0 %v738
          %v740 = vpop.xlane.xlu0 %739
          %v741 = vsel %vm396, %v695, 0.0
          %742 = vadd.xlane.f32.xlu0 %v741
          %v743 = vpop.xlane.xlu0 %742
          %s744 = scalar_lea.vmem %s324, %s662
          %vm745 = vcmask 7168
          %746 = vst.msk [vmem:[%s744] sm:$0xff] %vm745, %v698
          %747 = vst.msk [vmem:[%s744 + $0x8] sm:$0xff] %vm745, %v701
          %748 = vst.msk [vmem:[%s744 + $0x10] sm:$0xff] %vm745, %v704
          %749 = vst.msk [vmem:[%s744 + $0x18] sm:$0xff] %vm745, %v707
          %750 = vst.msk [vmem:[%s744 + $0x20] sm:$0xff] %vm745, %v710
          %751 = vst.msk [vmem:[%s744 + $0x28] sm:$0xff] %vm745, %v713
          %752 = vst.msk [vmem:[%s744 + $0x30] sm:$0xff] %vm745, %v716
          %753 = vst.msk [vmem:[%s744 + $0x38] sm:$0xff] %vm745, %v719
          %754 = vst.msk [vmem:[%s744 + $0x40] sm:$0xff] %vm745, %v722
          %755 = vst.msk [vmem:[%s744 + $0x48] sm:$0xff] %vm745, %v725
          %756 = vst.msk [vmem:[%s744 + $0x50] sm:$0xff] %vm745, %v728
          %757 = vst.msk [vmem:[%s744 + $0x58] sm:$0xff] %vm745, %v731
          %758 = vst.msk [vmem:[%s744 + $0x60] sm:$0xff] %vm745, %v734
          %759 = vst.msk [vmem:[%s744 + $0x68] sm:$0xff] %vm745, %v737
          %760 = vst.msk [vmem:[%s744 + $0x70] sm:$0xff] %vm745, %v740
          %761 = vst.msk [vmem:[%s744 + $0x78] sm:$0xff] %vm745, %v743
        $region40: #{tpu_custom_call.1} parent=31 // pred_fallthru
          _
        %762 = vmax.xlane.f32.xlu0 %v639
        %v763 = vpop.xlane.xlu0 %762
        %764 = vmax.xlane.f32.xlu0 %v640
        %v765 = vpop.xlane.xlu0 %764
        %766 = vmax.xlane.f32.xlu0 %v641
        %v767 = vpop.xlane.xlu0 %766
        %768 = vmax.xlane.f32.xlu0 %v642
        %v769 = vpop.xlane.xlu0 %768
        %770 = vmax.xlane.f32.xlu0 %v643
        %v771 = vpop.xlane.xlu0 %770
        %772 = vmax.xlane.f32.xlu0 %v644
        %v773 = vpop.xlane.xlu0 %772
        %774 = vmax.xlane.f32.xlu0 %v645
        %v775 = vpop.xlane.xlu0 %774
        %776 = vmax.xlane.f32.xlu0 %v646
        %v777 = vpop.xlane.xlu0 %776
        %778 = vmax.xlane.f32.xlu0 %v647
        %v779 = vpop.xlane.xlu0 %778
        %780 = vmax.xlane.f32.xlu0 %v648
        %v781 = vpop.xlane.xlu0 %780
        %782 = vmax.xlane.f32.xlu0 %v649
        %v783 = vpop.xlane.xlu0 %782
        %784 = vmax.xlane.f32.xlu0 %v650
        %v785 = vpop.xlane.xlu0 %784
        %786 = vmax.xlane.f32.xlu0 %v651
        %v787 = vpop.xlane.xlu0 %786
        %788 = vmax.xlane.f32.xlu0 %v652
        %v789 = vpop.xlane.xlu0 %788
        %790 = vmax.xlane.f32.xlu0 %v653
        %v791 = vpop.xlane.xlu0 %790
        %792 = vmax.xlane.f32.xlu0 %v654
        %v793 = vpop.xlane.xlu0 %792
        %v794 = vld [vmem:[#allocation2] sm:$0xff]
        %v795 = vld [vmem:[#allocation2 + $0x8] sm:$0xff]
        %v796 = vld [vmem:[#allocation2 + $0x10] sm:$0xff]
        %v797 = vld [vmem:[#allocation2 + $0x18] sm:$0xff]
        %v798 = vld [vmem:[#allocation2 + $0x20] sm:$0xff]
        %v799 = vld [vmem:[#allocation2 + $0x28] sm:$0xff]
        %v800 = vld [vmem:[#allocation2 + $0x30] sm:$0xff]
        %v801 = vld [vmem:[#allocation2 + $0x38] sm:$0xff]
        %v802 = vld [vmem:[#allocation2 + $0x40] sm:$0xff]
        %v803 = vld [vmem:[#allocation2 + $0x48] sm:$0xff]
        %v804 = vld [vmem:[#allocation2 + $0x50] sm:$0xff]
        %v805 = vld [vmem:[#allocation2 + $0x58] sm:$0xff]
        %v806 = vld [vmem:[#allocation2 + $0x60] sm:$0xff]
        %v807 = vld [vmem:[#allocation2 + $0x68] sm:$0xff]
        %v808 = vld [vmem:[#allocation2 + $0x70] sm:$0xff]
        %v809 = vld [vmem:[#allocation2 + $0x78] sm:$0xff]
        %v810 = vmax.f32 %v794, %v763
        %v811 = vmax.f32 %v795, %v765
        %v812 = vmax.f32 %v796, %v767
        %v813 = vmax.f32 %v797, %v769
        %v814 = vmax.f32 %v798, %v771
        %v815 = vmax.f32 %v799, %v773
        %v816 = vmax.f32 %v800, %v775
        %v817 = vmax.f32 %v801, %v777
        %v818 = vmax.f32 %v802, %v779
        %v819 = vmax.f32 %v803, %v781
        %v820 = vmax.f32 %v804, %v783
        %v821 = vmax.f32 %v805, %v785
        %v822 = vmax.f32 %v806, %v787
        %v823 = vmax.f32 %v807, %v789
        %v824 = vmax.f32 %v808, %v791
        %v825 = vmax.f32 %v809, %v793
        %v826 = vsub.f32 %v794, %v810
        %v827 = vsub.f32 %v795, %v811
        %v828 = vsub.f32 %v796, %v812
        %v829 = vsub.f32 %v797, %v813
        %v830 = vsub.f32 %v798, %v814
        %v831 = vsub.f32 %v799, %v815
        %v832 = vsub.f32 %v800, %v816
        %v833 = vsub.f32 %v801, %v817
        %v834 = vsub.f32 %v802, %v818
        %v835 = vsub.f32 %v803, %v819
        %v836 = vsub.f32 %v804, %v820
        %v837 = vsub.f32 %v805, %v821
        %v838 = vsub.f32 %v806, %v822
        %v839 = vsub.f32 %v807, %v823
        %v840 = vsub.f32 %v808, %v824
        %v841 = vsub.f32 %v809, %v825
        %v842 = vmul.f32 %v826, 1.442695
        %v843 = vpow.pop %v842
        %v844 = vmul.f32 %v827, 1.442695
        %v845 = vpow.pop %v844
        %v846 = vmul.f32 %v828, 1.442695
        %v847 = vpow.pop %v846
        %v848 = vmul.f32 %v829, 1.442695
        %v849 = vpow.pop %v848
        %v850 = vmul.f32 %v830, 1.442695
        %v851 = vpow.pop %v850
        %v852 = vmul.f32 %v831, 1.442695
        %v853 = vpow.pop %v852
        %v854 = vmul.f32 %v832, 1.442695
        %v855 = vpow.pop %v854
        %v856 = vmul.f32 %v833, 1.442695
        %v857 = vpow.pop %v856
        %v858 = vmul.f32 %v834, 1.442695
        %v859 = vpow.pop %v858
        %v860 = vmul.f32 %v835, 1.442695
        %v861 = vpow.pop %v860
        %v862 = vmul.f32 %v836, 1.442695
        %v863 = vpow.pop %v862
        %v864 = vmul.f32 %v837, 1.442695
        %v865 = vpow.pop %v864
        %v866 = vmul.f32 %v838, 1.442695
        %v867 = vpow.pop %v866
        %v868 = vmul.f32 %v839, 1.442695
        %v869 = vpow.pop %v868
        %v870 = vmul.f32 %v840, 1.442695
        %v871 = vpow.pop %v870
        %v872 = vmul.f32 %v841, 1.442695
        %v873 = vpow.pop %v872
        %v874 = vmax.f32 %v639, %v643
        %v875 = vmax.f32 %v640, %v644
        %v876 = vmax.f32 %v641, %v645
        %v877 = vmax.f32 %v642, %v646
        %v878 = vmax.f32 %v874, %v647
        %v879 = vmax.f32 %v875, %v648
        %v880 = vmax.f32 %v876, %v649
        %v881 = vmax.f32 %v877, %v650
        %v882 = vmax.f32 %v878, %v651
        %v883 = vmax.f32 %v879, %v652
        %v884 = vmax.f32 %v880, %v653
        %v885 = vmax.f32 %v881, %v654
        %v886 = vmax.f32 %v882, %v883
        %v887 = vmax.f32 %v884, %v885
        %v888 = vmax.f32 %v886, %v887
        %v889 = vrot.slane %v888, 4
        %v890 = vmax.f32 %v888, %v889
        %v891 = vrot.slane %v890, 2
        %v892 = vmax.f32 %v890, %v891
        %v893 = vrot.slane %v892, 1
        %v894 = vmax.f32 %v892, %v893
        %895 = vst [vmem:[%s295] sm:$0x1] %v894
        %p896 = scmp.le.f32.partialorder %s326, 40.0
        // Predicated region
        $region41: #{tpu_custom_call.1} parent=31 // pred_check
          %p897 = pneg %p896
        $region42: #{tpu_custom_call.1} parent=31 // pred_check_branch
          %899 = sbr.rel (%p897) target = $region44
        $region43: #{tpu_custom_call.1} parent=31 // pred_region
          %v900 = vmul.f32 %v639, 1.442695
          %v901 = vpow.pop %v900
          %v902 = vmul.f32 %v640, 1.442695
          %v903 = vpow.pop %v902
          %v904 = vmul.f32 %v641, 1.442695
          %v905 = vpow.pop %v904
          %v906 = vmul.f32 %v642, 1.442695
          %v907 = vpow.pop %v906
          %v908 = vmul.f32 %v643, 1.442695
          %v909 = vpow.pop %v908
          %v910 = vmul.f32 %v644, 1.442695
          %v911 = vpow.pop %v910
          %v912 = vmul.f32 %v645, 1.442695
          %v913 = vpow.pop %v912
          %v914 = vmul.f32 %v646, 1.442695
          %v915 = vpow.pop %v914
          %v916 = vmul.f32 %v647, 1.442695
          %v917 = vpow.pop %v916
          %v918 = vmul.f32 %v648, 1.442695
          %v919 = vpow.pop %v918
          %v920 = vmul.f32 %v649, 1.442695
          %v921 = vpow.pop %v920
          %v922 = vmul.f32 %v650, 1.442695
          %v923 = vpow.pop %v922
          %v924 = vmul.f32 %v651, 1.442695
          %v925 = vpow.pop %v924
          %v926 = vmul.f32 %v652, 1.442695
          %v927 = vpow.pop %v926
          %v928 = vmul.f32 %v653, 1.442695
          %v929 = vpow.pop %v928
          %v930 = vmul.f32 %v654, 1.442695
          %v931 = vpow.pop %v930
          %v932 = vld [vmem:[#allocation3] sm:$0xff]
          %v933 = vld [vmem:[#allocation3 + $0x8] sm:$0xff]
          %v934 = vld [vmem:[#allocation3 + $0x10] sm:$0xff]
          %v935 = vld [vmem:[#allocation3 + $0x18] sm:$0xff]
          %v936 = vld [vmem:[#allocation3 + $0x20] sm:$0xff]
          %v937 = vld [vmem:[#allocation3 + $0x28] sm:$0xff]
          %v938 = vld [vmem:[#allocation3 + $0x30] sm:$0xff]
          %v939 = vld [vmem:[#allocation3 + $0x38] sm:$0xff]
          %v940 = vld [vmem:[#allocation3 + $0x40] sm:$0xff]
          %v941 = vld [vmem:[#allocation3 + $0x48] sm:$0xff]
          %v942 = vld [vmem:[#allocation3 + $0x50] sm:$0xff]
          %v943 = vld [vmem:[#allocation3 + $0x58] sm:$0xff]
          %v944 = vld [vmem:[#allocation3 + $0x60] sm:$0xff]
          %v945 = vld [vmem:[#allocation3 + $0x68] sm:$0xff]
          %v946 = vld [vmem:[#allocation3 + $0x70] sm:$0xff]
          %v947 = vld [vmem:[#allocation3 + $0x78] sm:$0xff]
          %v948 = vmul.f32 %v932, %v843
          %v949 = vmul.f32 %v933, %v845
          %v950 = vmul.f32 %v934, %v847
          %v951 = vmul.f32 %v935, %v849
          %v952 = vmul.f32 %v936, %v851
          %v953 = vmul.f32 %v937, %v853
          %v954 = vmul.f32 %v938, %v855
          %v955 = vmul.f32 %v939, %v857
          %v956 = vmul.f32 %v940, %v859
          %v957 = vmul.f32 %v941, %v861
          %v958 = vmul.f32 %v942, %v863
          %v959 = vmul.f32 %v943, %v865
          %v960 = vmul.f32 %v944, %v867
          %v961 = vmul.f32 %v945, %v869
          %v962 = vmul.f32 %v946, %v871
          %v963 = vmul.f32 %v947, %v873
          %964 = vadd.xlane.f32.xlu0 %v901
          %v965 = vpop.xlane.xlu0 %964
          %966 = vadd.xlane.f32.xlu0 %v903
          %v967 = vpop.xlane.xlu0 %966
          %968 = vadd.xlane.f32.xlu0 %v905
          %v969 = vpop.xlane.xlu0 %968
          %970 = vadd.xlane.f32.xlu0 %v907
          %v971 = vpop.xlane.xlu0 %970
          %972 = vadd.xlane.f32.xlu0 %v909
          %v973 = vpop.xlane.xlu0 %972
          %974 = vadd.xlane.f32.xlu0 %v911
          %v975 = vpop.xlane.xlu0 %974
          %976 = vadd.xlane.f32.xlu0 %v913
          %v977 = vpop.xlane.xlu0 %976
          %978 = vadd.xlane.f32.xlu0 %v915
          %v979 = vpop.xlane.xlu0 %978
          %980 = vadd.xlane.f32.xlu0 %v917
          %v981 = vpop.xlane.xlu0 %980
          %982 = vadd.xlane.f32.xlu0 %v919
          %v983 = vpop.xlane.xlu0 %982
          %984 = vadd.xlane.f32.xlu0 %v921
          %v985 = vpop.xlane.xlu0 %984
          %986 = vadd.xlane.f32.xlu0 %v923
          %v987 = vpop.xlane.xlu0 %986
          %988 = vadd.xlane.f32.xlu0 %v925
          %v989 = vpop.xlane.xlu0 %988
          %990 = vadd.xlane.f32.xlu0 %v927
          %v991 = vpop.xlane.xlu0 %990
          %992 = vadd.xlane.f32.xlu0 %v929
          %v993 = vpop.xlane.xlu0 %992
          %994 = vadd.xlane.f32.xlu0 %v931
          %v995 = vpop.xlane.xlu0 %994
          %v996 = vsub.f32 0.0, %v810
          %v997 = vsub.f32 0.0, %v811
          %v998 = vsub.f32 0.0, %v812
          %v999 = vsub.f32 0.0, %v813
          %v1000 = vsub.f32 0.0, %v814
          %v1001 = vsub.f32 0.0, %v815
          %v1002 = vsub.f32 0.0, %v816
          %v1003 = vsub.f32 0.0, %v817
          %v1004 = vsub.f32 0.0, %v818
          %v1005 = vsub.f32 0.0, %v819
          %v1006 = vsub.f32 0.0, %v820
          %v1007 = vsub.f32 0.0, %v821
          %v1008 = vsub.f32 0.0, %v822
          %v1009 = vsub.f32 0.0, %v823
          %v1010 = vsub.f32 0.0, %v824
          %v1011 = vsub.f32 0.0, %v825
          %v1012 = vmul.f32 %v996, 1.442695
          %v1013 = vpow.pop %v1012
          %v1014 = vmul.f32 %v997, 1.442695
          %v1015 = vpow.pop %v1014
          %v1016 = vmul.f32 %v998, 1.442695
          %v1017 = vpow.pop %v1016
          %v1018 = vmul.f32 %v999, 1.442695
          %v1019 = vpow.pop %v1018
          %v1020 = vmul.f32 %v1000, 1.442695
          %v1021 = vpow.pop %v1020
          %v1022 = vmul.f32 %v1001, 1.442695
          %v1023 = vpow.pop %v1022
          %v1024 = vmul.f32 %v1002, 1.442695
          %v1025 = vpow.pop %v1024
          %v1026 = vmul.f32 %v1003, 1.442695
          %v1027 = vpow.pop %v1026
          %v1028 = vmul.f32 %v1004, 1.442695
          %v1029 = vpow.pop %v1028
          %v1030 = vmul.f32 %v1005, 1.442695
          %v1031 = vpow.pop %v1030
          %v1032 = vmul.f32 %v1006, 1.442695
          %v1033 = vpow.pop %v1032
          %v1034 = vmul.f32 %v1007, 1.442695
          %v1035 = vpow.pop %v1034
          %v1036 = vmul.f32 %v1008, 1.442695
          %v1037 = vpow.pop %v1036
          %v1038 = vmul.f32 %v1009, 1.442695
          %v1039 = vpow.pop %v1038
          %v1040 = vmul.f32 %v1010, 1.442695
          %v1041 = vpow.pop %v1040
          %v1042 = vmul.f32 %v1011, 1.442695
          %v1043 = vpow.pop %v1042
          %v1044 = vmul.f32 %v965, %v1013
          %v1045 = vmul.f32 %v967, %v1015
          %v1046 = vmul.f32 %v969, %v1017
          %v1047 = vmul.f32 %v971, %v1019
          %v1048 = vmul.f32 %v973, %v1021
          %v1049 = vmul.f32 %v975, %v1023
          %v1050 = vmul.f32 %v977, %v1025
          %v1051 = vmul.f32 %v979, %v1027
          %v1052 = vmul.f32 %v981, %v1029
          %v1053 = vmul.f32 %v983, %v1031
          %v1054 = vmul.f32 %v985, %v1033
          %v1055 = vmul.f32 %v987, %v1035
          %v1056 = vmul.f32 %v989, %v1037
          %v1057 = vmul.f32 %v991, %v1039
          %v1058 = vmul.f32 %v993, %v1041
          %v1059 = vmul.f32 %v995, %v1043
          %v1060 = vadd.f32 %v948, %v1044
          %v1061 = vadd.f32 %v949, %v1045
          %v1062 = vadd.f32 %v950, %v1046
          %v1063 = vadd.f32 %v951, %v1047
          %v1064 = vadd.f32 %v952, %v1048
          %v1065 = vadd.f32 %v953, %v1049
          %v1066 = vadd.f32 %v954, %v1050
          %v1067 = vadd.f32 %v955, %v1051
          %v1068 = vadd.f32 %v956, %v1052
          %v1069 = vadd.f32 %v957, %v1053
          %v1070 = vadd.f32 %v958, %v1054
          %v1071 = vadd.f32 %v959, %v1055
          %v1072 = vadd.f32 %v960, %v1056
          %v1073 = vadd.f32 %v961, %v1057
          %v1074 = vadd.f32 %v962, %v1058
          %v1075 = vadd.f32 %v963, %v1059
          %vm1076 = vcmask 7168
          %1077 = vst.msk [vmem:[#allocation3] sm:$0xff] %vm1076, %v1060
          %1078 = vst.msk [vmem:[#allocation3 + $0x8] sm:$0xff] %vm1076, %v1061
          %1079 = vst.msk [vmem:[#allocation3 + $0x10] sm:$0xff] %vm1076, %v1062
          %1080 = vst.msk [vmem:[#allocation3 + $0x18] sm:$0xff] %vm1076, %v1063
          %1081 = vst.msk [vmem:[#allocation3 + $0x20] sm:$0xff] %vm1076, %v1064
          %1082 = vst.msk [vmem:[#allocation3 + $0x28] sm:$0xff] %vm1076, %v1065
          %1083 = vst.msk [vmem:[#allocation3 + $0x30] sm:$0xff] %vm1076, %v1066
          %1084 = vst.msk [vmem:[#allocation3 + $0x38] sm:$0xff] %vm1076, %v1067
          %1085 = vst.msk [vmem:[#allocation3 + $0x40] sm:$0xff] %vm1076, %v1068
          %1086 = vst.msk [vmem:[#allocation3 + $0x48] sm:$0xff] %vm1076, %v1069
          %1087 = vst.msk [vmem:[#allocation3 + $0x50] sm:$0xff] %vm1076, %v1070
          %1088 = vst.msk [vmem:[#allocation3 + $0x58] sm:$0xff] %vm1076, %v1071
          %1089 = vst.msk [vmem:[#allocation3 + $0x60] sm:$0xff] %vm1076, %v1072
          %1090 = vst.msk [vmem:[#allocation3 + $0x68] sm:$0xff] %vm1076, %v1073
          %1091 = vst.msk [vmem:[#allocation3 + $0x70] sm:$0xff] %vm1076, %v1074
          %1092 = vst.msk [vmem:[#allocation3 + $0x78] sm:$0xff] %vm1076, %v1075
          %v1093 = vadd.f32 %v901, %v903
          %v1094 = vadd.f32 %v1093, %v905
          %v1095 = vadd.f32 %v1094, %v907
          %v1096 = vadd.f32 %v1095, %v909
          %v1097 = vadd.f32 %v1096, %v911
          %v1098 = vadd.f32 %v1097, %v913
          %v1099 = vadd.f32 %v1098, %v915
          %v1100 = vadd.f32 %v1099, %v917
          %v1101 = vadd.f32 %v1100, %v919
          %v1102 = vadd.f32 %v1101, %v921
          %v1103 = vadd.f32 %v1102, %v923
          %v1104 = vadd.f32 %v1103, %v925
          %v1105 = vadd.f32 %v1104, %v927
          %v1106 = vadd.f32 %v1105, %v929
          %v1107 = vadd.f32 %v1106, %v931
          %v1108 = vrot.slane %v1107, 4
          %v1109 = vadd.f32 %v1107, %v1108
          %v1110 = vrot.slane %v1109, 2
          %v1111 = vadd.f32 %v1109, %v1110
          %v1112 = vrot.slane %v1111, 1
          %v1113 = vadd.f32 %v1111, %v1112
          %v1114 = vsub.f32 0.0, %v894
          %v1115 = vmul.f32 %v1114, 1.442695
          %v1116 = vpow.pop %v1115
          %v1117 = vmul.f32 %v1113, %v1116
          %1118 = vst [vmem:[%s301] sm:$0x1] %v1117
        $region44: #{tpu_custom_call.1} parent=31 // pred_fallthru
          _
        %p1119 = pneg %p896
        // Predicated region
        $region45: #{tpu_custom_call.1} parent=31 // pred_check
          _
        $region46: #{tpu_custom_call.1} parent=31 // pred_check_branch
          %1121 = sbr.rel (%p896) target = $region48
        $region47: #{tpu_custom_call.1} parent=31 // pred_region
          %v1122 = vld [vmem:[#allocation3] sm:$0xff]
          %v1123 = vld [vmem:[#allocation3 + $0x8] sm:$0xff]
          %v1124 = vld [vmem:[#allocation3 + $0x10] sm:$0xff]
          %v1125 = vld [vmem:[#allocation3 + $0x18] sm:$0xff]
          %v1126 = vld [vmem:[#allocation3 + $0x20] sm:$0xff]
          %v1127 = vld [vmem:[#allocation3 + $0x28] sm:$0xff]
          %v1128 = vld [vmem:[#allocation3 + $0x30] sm:$0xff]
          %v1129 = vld [vmem:[#allocation3 + $0x38] sm:$0xff]
          %v1130 = vld [vmem:[#allocation3 + $0x40] sm:$0xff]
          %v1131 = vld [vmem:[#allocation3 + $0x48] sm:$0xff]
          %v1132 = vld [vmem:[#allocation3 + $0x50] sm:$0xff]
          %v1133 = vld [vmem:[#allocation3 + $0x58] sm:$0xff]
          %v1134 = vld [vmem:[#allocation3 + $0x60] sm:$0xff]
          %v1135 = vld [vmem:[#allocation3 + $0x68] sm:$0xff]
          %v1136 = vld [vmem:[#allocation3 + $0x70] sm:$0xff]
          %v1137 = vld [vmem:[#allocation3 + $0x78] sm:$0xff]
          %v1138 = vmul.f32 %v1122, %v843
          %v1139 = vmul.f32 %v1123, %v845
          %v1140 = vmul.f32 %v1124, %v847
          %v1141 = vmul.f32 %v1125, %v849
          %v1142 = vmul.f32 %v1126, %v851
          %v1143 = vmul.f32 %v1127, %v853
          %v1144 = vmul.f32 %v1128, %v855
          %v1145 = vmul.f32 %v1129, %v857
          %v1146 = vmul.f32 %v1130, %v859
          %v1147 = vmul.f32 %v1131, %v861
          %v1148 = vmul.f32 %v1132, %v863
          %v1149 = vmul.f32 %v1133, %v865
          %v1150 = vmul.f32 %v1134, %v867
          %v1151 = vmul.f32 %v1135, %v869
          %v1152 = vmul.f32 %v1136, %v871
          %v1153 = vmul.f32 %v1137, %v873
          %1155 = vset.pattern.permute.xlu0 0
          %1156 = vperm.xlu0 %1155, %v810
          %v1157 = vpop.permute.xlu0 %1156
          %1160 = vset.pattern.permute.xlu0 0
          %1161 = vperm.xlu0 %1160, %v811
          %v1162 = vpop.permute.xlu0 %1161
          %1165 = vset.pattern.permute.xlu0 0
          %1166 = vperm.xlu0 %1165, %v812
          %v1167 = vpop.permute.xlu0 %1166
          %1170 = vset.pattern.permute.xlu0 0
          %1171 = vperm.xlu0 %1170, %v813
          %v1172 = vpop.permute.xlu0 %1171
          %1175 = vset.pattern.permute.xlu0 0
          %1176 = vperm.xlu0 %1175, %v814
          %v1177 = vpop.permute.xlu0 %1176
          %1180 = vset.pattern.permute.xlu0 0
          %1181 = vperm.xlu0 %1180, %v815
          %v1182 = vpop.permute.xlu0 %1181
          %1185 = vset.pattern.permute.xlu0 0
          %1186 = vperm.xlu0 %1185, %v816
          %v1187 = vpop.permute.xlu0 %1186
          %1190 = vset.pattern.permute.xlu0 0
          %1191 = vperm.xlu0 %1190, %v817
          %v1192 = vpop.permute.xlu0 %1191
          %1195 = vset.pattern.permute.xlu0 0
          %1196 = vperm.xlu0 %1195, %v818
          %v1197 = vpop.permute.xlu0 %1196
          %1200 = vset.pattern.permute.xlu0 0
          %1201 = vperm.xlu0 %1200, %v819
          %v1202 = vpop.permute.xlu0 %1201
          %1205 = vset.pattern.permute.xlu0 0
          %1206 = vperm.xlu0 %1205, %v820
          %v1207 = vpop.permute.xlu0 %1206
          %1210 = vset.pattern.permute.xlu0 0
          %1211 = vperm.xlu0 %1210, %v821
          %v1212 = vpop.permute.xlu0 %1211
          %1215 = vset.pattern.permute.xlu0 0
          %1216 = vperm.xlu0 %1215, %v822
          %v1217 = vpop.permute.xlu0 %1216
          %1220 = vset.pattern.permute.xlu0 0
          %1221 = vperm.xlu0 %1220, %v823
          %v1222 = vpop.permute.xlu0 %1221
          %1225 = vset.pattern.permute.xlu0 0
          %1226 = vperm.xlu0 %1225, %v824
          %v1227 = vpop.permute.xlu0 %1226
          %1230 = vset.pattern.permute.xlu0 0
          %1231 = vperm.xlu0 %1230, %v825
          %v1232 = vpop.permute.xlu0 %1231
          %v1234 = vsub.f32 %v639, %v1157
          %v1235 = vsub.f32 %v640, %v1162
          %v1236 = vsub.f32 %v641, %v1167
          %v1237 = vsub.f32 %v642, %v1172
          %v1238 = vsub.f32 %v643, %v1177
          %v1239 = vsub.f32 %v644, %v1182
          %v1240 = vsub.f32 %v645, %v1187
          %v1241 = vsub.f32 %v646, %v1192
          %v1242 = vsub.f32 %v647, %v1197
          %v1243 = vsub.f32 %v648, %v1202
          %v1244 = vsub.f32 %v649, %v1207
          %v1245 = vsub.f32 %v650, %v1212
          %v1246 = vsub.f32 %v651, %v1217
          %v1247 = vsub.f32 %v652, %v1222
          %v1248 = vsub.f32 %v653, %v1227
          %v1249 = vsub.f32 %v654, %v1232
          %v1250 = vmul.f32 %v1234, 1.442695
          %v1251 = vpow.pop %v1250
          %v1252 = vmul.f32 %v1235, 1.442695
          %v1253 = vpow.pop %v1252
          %v1254 = vmul.f32 %v1236, 1.442695
          %v1255 = vpow.pop %v1254
          %v1256 = vmul.f32 %v1237, 1.442695
          %v1257 = vpow.pop %v1256
          %v1258 = vmul.f32 %v1238, 1.442695
          %v1259 = vpow.pop %v1258
          %v1260 = vmul.f32 %v1239, 1.442695
          %v1261 = vpow.pop %v1260
          %v1262 = vmul.f32 %v1240, 1.442695
          %v1263 = vpow.pop %v1262
          %v1264 = vmul.f32 %v1241, 1.442695
          %v1265 = vpow.pop %v1264
          %v1266 = vmul.f32 %v1242, 1.442695
          %v1267 = vpow.pop %v1266
          %v1268 = vmul.f32 %v1243, 1.442695
          %v1269 = vpow.pop %v1268
          %v1270 = vmul.f32 %v1244, 1.442695
          %v1271 = vpow.pop %v1270
          %v1272 = vmul.f32 %v1245, 1.442695
          %v1273 = vpow.pop %v1272
          %v1274 = vmul.f32 %v1246, 1.442695
          %v1275 = vpow.pop %v1274
          %v1276 = vmul.f32 %v1247, 1.442695
          %v1277 = vpow.pop %v1276
          %v1278 = vmul.f32 %v1248, 1.442695
          %v1279 = vpow.pop %v1278
          %v1280 = vmul.f32 %v1249, 1.442695
          %v1281 = vpow.pop %v1280
          %1282 = vadd.xlane.f32.xlu0 %v1251
          %v1283 = vpop.xlane.xlu0 %1282
          %1284 = vadd.xlane.f32.xlu0 %v1253
          %v1285 = vpop.xlane.xlu0 %1284
          %1286 = vadd.xlane.f32.xlu0 %v1255
          %v1287 = vpop.xlane.xlu0 %1286
          %1288 = vadd.xlane.f32.xlu0 %v1257
          %v1289 = vpop.xlane.xlu0 %1288
          %1290 = vadd.xlane.f32.xlu0 %v1259
          %v1291 = vpop.xlane.xlu0 %1290
          %1292 = vadd.xlane.f32.xlu0 %v1261
          %v1293 = vpop.xlane.xlu0 %1292
          %1294 = vadd.xlane.f32.xlu0 %v1263
          %v1295 = vpop.xlane.xlu0 %1294
          %1296 = vadd.xlane.f32.xlu0 %v1265
          %v1297 = vpop.xlane.xlu0 %1296
          %1298 = vadd.xlane.f32.xlu0 %v1267
          %v1299 = vpop.xlane.xlu0 %1298
          %1300 = vadd.xlane.f32.xlu0 %v1269
          %v1301 = vpop.xlane.xlu0 %1300
          %1302 = vadd.xlane.f32.xlu0 %v1271
          %v1303 = vpop.xlane.xlu0 %1302
          %1304 = vadd.xlane.f32.xlu0 %v1273
          %v1305 = vpop.xlane.xlu0 %1304
          %1306 = vadd.xlane.f32.xlu0 %v1275
          %v1307 = vpop.xlane.xlu0 %1306
          %1308 = vadd.xlane.f32.xlu0 %v1277
          %v1309 = vpop.xlane.xlu0 %1308
          %1310 = vadd.xlane.f32.xlu0 %v1279
          %v1311 = vpop.xlane.xlu0 %1310
          %1312 = vadd.xlane.f32.xlu0 %v1281
          %v1313 = vpop.xlane.xlu0 %1312
          %v1314 = vadd.f32 %v1138, %v1283
          %v1315 = vadd.f32 %v1139, %v1285
          %v1316 = vadd.f32 %v1140, %v1287
          %v1317 = vadd.f32 %v1141, %v1289
          %v1318 = vadd.f32 %v1142, %v1291
          %v1319 = vadd.f32 %v1143, %v1293
          %v1320 = vadd.f32 %v1144, %v1295
          %v1321 = vadd.f32 %v1145, %v1297
          %v1322 = vadd.f32 %v1146, %v1299
          %v1323 = vadd.f32 %v1147, %v1301
          %v1324 = vadd.f32 %v1148, %v1303
          %v1325 = vadd.f32 %v1149, %v1305
          %v1326 = vadd.f32 %v1150, %v1307
          %v1327 = vadd.f32 %v1151, %v1309
          %v1328 = vadd.f32 %v1152, %v1311
          %v1329 = vadd.f32 %v1153, %v1313
          %vm1330 = vcmask 7168
          %1331 = vst.msk [vmem:[#allocation3] sm:$0xff] %vm1330, %v1314
          %1332 = vst.msk [vmem:[#allocation3 + $0x8] sm:$0xff] %vm1330, %v1315
          %1333 = vst.msk [vmem:[#allocation3 + $0x10] sm:$0xff] %vm1330, %v1316
          %1334 = vst.msk [vmem:[#allocation3 + $0x18] sm:$0xff] %vm1330, %v1317
          %1335 = vst.msk [vmem:[#allocation3 + $0x20] sm:$0xff] %vm1330, %v1318
          %1336 = vst.msk [vmem:[#allocation3 + $0x28] sm:$0xff] %vm1330, %v1319
          %1337 = vst.msk [vmem:[#allocation3 + $0x30] sm:$0xff] %vm1330, %v1320
          %1338 = vst.msk [vmem:[#allocation3 + $0x38] sm:$0xff] %vm1330, %v1321
          %1339 = vst.msk [vmem:[#allocation3 + $0x40] sm:$0xff] %vm1330, %v1322
          %1340 = vst.msk [vmem:[#allocation3 + $0x48] sm:$0xff] %vm1330, %v1323
          %1341 = vst.msk [vmem:[#allocation3 + $0x50] sm:$0xff] %vm1330, %v1324
          %1342 = vst.msk [vmem:[#allocation3 + $0x58] sm:$0xff] %vm1330, %v1325
          %1343 = vst.msk [vmem:[#allocation3 + $0x60] sm:$0xff] %vm1330, %v1326
          %1344 = vst.msk [vmem:[#allocation3 + $0x68] sm:$0xff] %vm1330, %v1327
          %1345 = vst.msk [vmem:[#allocation3 + $0x70] sm:$0xff] %vm1330, %v1328
          %1346 = vst.msk [vmem:[#allocation3 + $0x78] sm:$0xff] %vm1330, %v1329
          %v1347 = vsub.f32 %v639, %v894
          %v1348 = vsub.f32 %v640, %v894
          %v1349 = vsub.f32 %v641, %v894
          %v1350 = vsub.f32 %v642, %v894
          %v1351 = vsub.f32 %v643, %v894
          %v1352 = vsub.f32 %v644, %v894
          %v1353 = vsub.f32 %v645, %v894
          %v1354 = vsub.f32 %v646, %v894
          %v1355 = vsub.f32 %v647, %v894
          %v1356 = vsub.f32 %v648, %v894
          %v1357 = vsub.f32 %v649, %v894
          %v1358 = vsub.f32 %v650, %v894
          %v1359 = vsub.f32 %v651, %v894
          %v1360 = vsub.f32 %v652, %v894
          %v1361 = vsub.f32 %v653, %v894
          %v1362 = vsub.f32 %v654, %v894
          %v1363 = vmul.f32 %v1347, 1.442695
          %v1364 = vpow.pop %v1363
          %v1365 = vmul.f32 %v1348, 1.442695
          %v1366 = vpow.pop %v1365
          %v1367 = vmul.f32 %v1349, 1.442695
          %v1368 = vpow.pop %v1367
          %v1369 = vmul.f32 %v1350, 1.442695
          %v1370 = vpow.pop %v1369
          %v1371 = vmul.f32 %v1351, 1.442695
          %v1372 = vpow.pop %v1371
          %v1373 = vmul.f32 %v1352, 1.442695
          %v1374 = vpow.pop %v1373
          %v1375 = vmul.f32 %v1353, 1.442695
          %v1376 = vpow.pop %v1375
          %v1377 = vmul.f32 %v1354, 1.442695
          %v1378 = vpow.pop %v1377
          %v1379 = vmul.f32 %v1355, 1.442695
          %v1380 = vpow.pop %v1379
          %v1381 = vmul.f32 %v1356, 1.442695
          %v1382 = vpow.pop %v1381
          %v1383 = vmul.f32 %v1357, 1.442695
          %v1384 = vpow.pop %v1383
          %v1385 = vmul.f32 %v1358, 1.442695
          %v1386 = vpow.pop %v1385
          %v1387 = vmul.f32 %v1359, 1.442695
          %v1388 = vpow.pop %v1387
          %v1389 = vmul.f32 %v1360, 1.442695
          %v1390 = vpow.pop %v1389
          %v1391 = vmul.f32 %v1361, 1.442695
          %v1392 = vpow.pop %v1391
          %v1393 = vmul.f32 %v1362, 1.442695
          %v1394 = vpow.pop %v1393
          %v1395 = vadd.f32 %v1364, %v1366
          %v1396 = vadd.f32 %v1395, %v1368
          %v1397 = vadd.f32 %v1396, %v1370
          %v1398 = vadd.f32 %v1397, %v1372
          %v1399 = vadd.f32 %v1398, %v1374
          %v1400 = vadd.f32 %v1399, %v1376
          %v1401 = vadd.f32 %v1400, %v1378
          %v1402 = vadd.f32 %v1401, %v1380
          %v1403 = vadd.f32 %v1402, %v1382
          %v1404 = vadd.f32 %v1403, %v1384
          %v1405 = vadd.f32 %v1404, %v1386
          %v1406 = vadd.f32 %v1405, %v1388
          %v1407 = vadd.f32 %v1406, %v1390
          %v1408 = vadd.f32 %v1407, %v1392
          %v1409 = vadd.f32 %v1408, %v1394
          %v1410 = vrot.slane %v1409, 4
          %v1411 = vadd.f32 %v1409, %v1410
          %v1412 = vrot.slane %v1411, 2
          %v1413 = vadd.f32 %v1411, %v1412
          %v1414 = vrot.slane %v1413, 1
          %v1415 = vadd.f32 %v1413, %v1414
          %1416 = vst [vmem:[%s301] sm:$0x1] %v1415
        $region48: #{tpu_custom_call.1} parent=31 // pred_fallthru
          _
        %vm1417 = vcmask 7168
        %1418 = vst.msk [vmem:[#allocation2] sm:$0xff] %vm1417, %v810
        %1419 = vst.msk [vmem:[#allocation2 + $0x8] sm:$0xff] %vm1417, %v811
        %1420 = vst.msk [vmem:[#allocation2 + $0x10] sm:$0xff] %vm1417, %v812
        %1421 = vst.msk [vmem:[#allocation2 + $0x18] sm:$0xff] %vm1417, %v813
        %1422 = vst.msk [vmem:[#allocation2 + $0x20] sm:$0xff] %vm1417, %v814
        %1423 = vst.msk [vmem:[#allocation2 + $0x28] sm:$0xff] %vm1417, %v815
        %1424 = vst.msk [vmem:[#allocation2 + $0x30] sm:$0xff] %vm1417, %v816
        %1425 = vst.msk [vmem:[#allocation2 + $0x38] sm:$0xff] %vm1417, %v817
        %1426 = vst.msk [vmem:[#allocation2 + $0x40] sm:$0xff] %vm1417, %v818
        %1427 = vst.msk [vmem:[#allocation2 + $0x48] sm:$0xff] %vm1417, %v819
        %1428 = vst.msk [vmem:[#allocation2 + $0x50] sm:$0xff] %vm1417, %v820
        %1429 = vst.msk [vmem:[#allocation2 + $0x58] sm:$0xff] %vm1417, %v821
        %1430 = vst.msk [vmem:[#allocation2 + $0x60] sm:$0xff] %vm1417, %v822
        %1431 = vst.msk [vmem:[#allocation2 + $0x68] sm:$0xff] %vm1417, %v823
        %1432 = vst.msk [vmem:[#allocation2 + $0x70] sm:$0xff] %vm1417, %v824
        %1433 = vst.msk [vmem:[#allocation2 + $0x78] sm:$0xff] %vm1417, %v825
        %p1434 = scmp.eq.s32.totalorder %s30, 1
        // Predicated region
        $region49: #{tpu_custom_call.1} parent=31 // pred_check
          %p1435 = pneg %p1434
        $region50: #{tpu_custom_call.1} parent=31 // pred_check_branch
          %1437 = sbr.rel (%p1435) target = $region52
        $region51: #{tpu_custom_call.1} parent=31 // pred_region
          %v1438 = vld [vmem:[#allocation2] sm:$0xff]
          %v1439 = vld [vmem:[#allocation2 + $0x8] sm:$0xff]
          %v1440 = vld [vmem:[#allocation2 + $0x10] sm:$0xff]
          %v1441 = vld [vmem:[#allocation2 + $0x18] sm:$0xff]
          %v1442 = vld [vmem:[#allocation2 + $0x20] sm:$0xff]
          %v1443 = vld [vmem:[#allocation2 + $0x28] sm:$0xff]
          %v1444 = vld [vmem:[#allocation2 + $0x30] sm:$0xff]
          %v1445 = vld [vmem:[#allocation2 + $0x38] sm:$0xff]
          %v1446 = vld [vmem:[#allocation2 + $0x40] sm:$0xff]
          %v1447 = vld [vmem:[#allocation2 + $0x48] sm:$0xff]
          %v1448 = vld [vmem:[#allocation2 + $0x50] sm:$0xff]
          %v1449 = vld [vmem:[#allocation2 + $0x58] sm:$0xff]
          %v1450 = vld [vmem:[#allocation2 + $0x60] sm:$0xff]
          %v1451 = vld [vmem:[#allocation2 + $0x68] sm:$0xff]
          %v1452 = vld [vmem:[#allocation2 + $0x70] sm:$0xff]
          %v1453 = vld [vmem:[#allocation2 + $0x78] sm:$0xff]
          %v1454 = vld [vmem:[#allocation3] sm:$0xff]
          %v1455 = vld [vmem:[#allocation3 + $0x8] sm:$0xff]
          %v1456 = vld [vmem:[#allocation3 + $0x10] sm:$0xff]
          %v1457 = vld [vmem:[#allocation3 + $0x18] sm:$0xff]
          %v1458 = vld [vmem:[#allocation3 + $0x20] sm:$0xff]
          %v1459 = vld [vmem:[#allocation3 + $0x28] sm:$0xff]
          %v1460 = vld [vmem:[#allocation3 + $0x30] sm:$0xff]
          %v1461 = vld [vmem:[#allocation3 + $0x38] sm:$0xff]
          %v1462 = vld [vmem:[#allocation3 + $0x40] sm:$0xff]
          %v1463 = vld [vmem:[#allocation3 + $0x48] sm:$0xff]
          %v1464 = vld [vmem:[#allocation3 + $0x50] sm:$0xff]
          %v1465 = vld [vmem:[#allocation3 + $0x58] sm:$0xff]
          %v1466 = vld [vmem:[#allocation3 + $0x60] sm:$0xff]
          %v1467 = vld [vmem:[#allocation3 + $0x68] sm:$0xff]
          %v1468 = vld [vmem:[#allocation3 + $0x70] sm:$0xff]
          %v1469 = vld [vmem:[#allocation3 + $0x78] sm:$0xff]
          %v1470 = vlog2.pop %v1454
          %v1471 = vmul.f32 %v1470, 0.6931472
          %v1472 = vlog2.pop %v1455
          %v1473 = vmul.f32 %v1472, 0.6931472
          %v1474 = vlog2.pop %v1456
          %v1475 = vmul.f32 %v1474, 0.6931472
          %v1476 = vlog2.pop %v1457
          %v1477 = vmul.f32 %v1476, 0.6931472
          %v1478 = vlog2.pop %v1458
          %v1479 = vmul.f32 %v1478, 0.6931472
          %v1480 = vlog2.pop %v1459
          %v1481 = vmul.f32 %v1480, 0.6931472
          %v1482 = vlog2.pop %v1460
          %v1483 = vmul.f32 %v1482, 0.6931472
          %v1484 = vlog2.pop %v1461
          %v1485 = vmul.f32 %v1484, 0.6931472
          %v1486 = vlog2.pop %v1462
          %v1487 = vmul.f32 %v1486, 0.6931472
          %v1488 = vlog2.pop %v1463
          %v1489 = vmul.f32 %v1488, 0.6931472
          %v1490 = vlog2.pop %v1464
          %v1491 = vmul.f32 %v1490, 0.6931472
          %v1492 = vlog2.pop %v1465
          %v1493 = vmul.f32 %v1492, 0.6931472
          %v1494 = vlog2.pop %v1466
          %v1495 = vmul.f32 %v1494, 0.6931472
          %v1496 = vlog2.pop %v1467
          %v1497 = vmul.f32 %v1496, 0.6931472
          %v1498 = vlog2.pop %v1468
          %v1499 = vmul.f32 %v1498, 0.6931472
          %v1500 = vlog2.pop %v1469
          %v1501 = vmul.f32 %v1500, 0.6931472
          %v1502 = vadd.f32 %v1438, %v1471
          %v1503 = vadd.f32 %v1439, %v1473
          %v1504 = vadd.f32 %v1440, %v1475
          %v1505 = vadd.f32 %v1441, %v1477
          %v1506 = vadd.f32 %v1442, %v1479
          %v1507 = vadd.f32 %v1443, %v1481
          %v1508 = vadd.f32 %v1444, %v1483
          %v1509 = vadd.f32 %v1445, %v1485
          %v1510 = vadd.f32 %v1446, %v1487
          %v1511 = vadd.f32 %v1447, %v1489
          %v1512 = vadd.f32 %v1448, %v1491
          %v1513 = vadd.f32 %v1449, %v1493
          %v1514 = vadd.f32 %v1450, %v1495
          %v1515 = vadd.f32 %v1451, %v1497
          %v1516 = vadd.f32 %v1452, %v1499
          %v1517 = vadd.f32 %v1453, %v1501
          %1518 = vst.msk [vmem:[%s318] sm:$0xff] %vm1417, %v1502
          %1519 = vst.msk [vmem:[%s318 + $0x8] sm:$0xff] %vm1417, %v1503
          %1520 = vst.msk [vmem:[%s318 + $0x10] sm:$0xff] %vm1417, %v1504
          %1521 = vst.msk [vmem:[%s318 + $0x18] sm:$0xff] %vm1417, %v1505
          %1522 = vst.msk [vmem:[%s318 + $0x20] sm:$0xff] %vm1417, %v1506
          %1523 = vst.msk [vmem:[%s318 + $0x28] sm:$0xff] %vm1417, %v1507
          %1524 = vst.msk [vmem:[%s318 + $0x30] sm:$0xff] %vm1417, %v1508
          %1525 = vst.msk [vmem:[%s318 + $0x38] sm:$0xff] %vm1417, %v1509
          %1526 = vst.msk [vmem:[%s318 + $0x40] sm:$0xff] %vm1417, %v1510
          %1527 = vst.msk [vmem:[%s318 + $0x48] sm:$0xff] %vm1417, %v1511
          %1528 = vst.msk [vmem:[%s318 + $0x50] sm:$0xff] %vm1417, %v1512
          %1529 = vst.msk [vmem:[%s318 + $0x58] sm:$0xff] %vm1417, %v1513
          %1530 = vst.msk [vmem:[%s318 + $0x60] sm:$0xff] %vm1417, %v1514
          %1531 = vst.msk [vmem:[%s318 + $0x68] sm:$0xff] %vm1417, %v1515
          %1532 = vst.msk [vmem:[%s318 + $0x70] sm:$0xff] %vm1417, %v1516
          %1533 = vst.msk [vmem:[%s318 + $0x78] sm:$0xff] %vm1417, %v1517
        $region52: #{tpu_custom_call.1} parent=31 // pred_fallthru
          _
        %s1534 = smul.u32 16, %s29
        %p1535 = scmp.lt.s32.totalorder %s1534, 31
        %s1536 = scalar_select %p1535, %s1534, 31
        %s1537 = smul.addr %s1536, 8
        %s1538 = scalar_lea.vmem %s3, %s1537
        %s1539 = smul.u32 16, %s29
        %p1540 = scmp.lt.s32.totalorder %s1539, 31
        %s1541 = scalar_select %p1540, %s1539, 31
        %s1542 = smul.addr %s1541, 8
        %s1543 = scalar_lea.vmem %s4, %s1542
        %s1544 = sand.u32 %s172, 1
        %s1545 = scalar_lea.sflag [#allocation6], %s1544
        %s1546 = sand.u32 %s172, 1
        %s1547 = scalar_lea.vmem [#allocation5], %s1546
        %s1548 = sand.u32 %s200, 1
        %s1549 = scalar_lea.sflag [#allocation8], %s1548
        %s1550 = sand.u32 %s200, 1
        %s1551 = scalar_lea.vmem [#allocation7], %s1550
        // Predicated region
        $region53: #{tpu_custom_call.1} parent=31 // pred_check
          %p1552 = pneg %p128
        $region54: #{tpu_custom_call.1} parent=31 // pred_check_branch
          %1554 = sbr.rel (%p1552) target = $region56
        $region55: #{tpu_custom_call.1} parent=31 // pred_region
          %s1555 = smul.u32 16, %s29
        $region56: #{tpu_custom_call.1} parent=31 // pred_fallthru
          _
        // Predicated region
        $region57: #{tpu_custom_call.1} parent=31 // pred_check
          %p1556 = pneg %p154
        $region58: #{tpu_custom_call.1} parent=31 // pred_check_branch
          %1558 = sbr.rel (%p1556) target = $region60
        $region59: #{tpu_custom_call.1} parent=31 // pred_region
          %s1559 = smul.u32 16, %s29
        $region60: #{tpu_custom_call.1} parent=31 // pred_fallthru
          _
        // Predicated region
        $region61: #{tpu_custom_call.1} parent=31 // pred_check
          %p1560 = pneg %p182
        $region62: #{tpu_custom_call.1} parent=31 // pred_check_branch
          %1562 = sbr.rel (%p1560) target = $region64
        $region63: #{tpu_custom_call.1} parent=31 // pred_region
          %s1564 = ssub.s32 16, 16
          %1565 = vsyncadd %s1545, %s1564
          %s1566 = smul.addr %s29, 2
          %s1567 = sadd.s32 %s30, %s1566
          %s1568 = smul.addr %s1567, 16
          %s1569 = scalar_lea.hbm %s5, %s1568
          %s1571 = sshll.u32 %s1547, 4
          %s1572 = int_to_ptr.vmem [resolvable:$true] %s1571
          %1574 = dma.vmem_to_hbm [thread:$0]  %s1572, 16, %s1569, %s1545
        $region64: #{tpu_custom_call.1} parent=31 // pred_fallthru
          _
        // Predicated region
        $region65: #{tpu_custom_call.1} parent=31 // pred_check
          %p1575 = pneg %p210
        $region66: #{tpu_custom_call.1} parent=31 // pred_check_branch
          %1577 = sbr.rel (%p1575) target = $region68
        $region67: #{tpu_custom_call.1} parent=31 // pred_region
          %s1579 = ssub.s32 16, 16
          %1580 = vsyncadd %s1549, %s1579
          %s1581 = smul.addr %s29, 2
          %s1582 = sadd.s32 %s30, %s1581
          %s1583 = smul.addr %s1582, 16
          %s1584 = scalar_lea.hbm %s6, %s1583
          %s1586 = sshll.u32 %s1551, 4
          %s1587 = int_to_ptr.vmem [resolvable:$true] %s1586
          %1589 = dma.vmem_to_hbm [thread:$0]  %s1587, 16, %s1584, %s1549
        $region68: #{tpu_custom_call.1} parent=31 // pred_fallthru
          _
      $region32: #{tpu_custom_call.1} parent=5 // pred_fallthru
        _
      %p1590 = scmp.le.s32.totalorder 2, %s20
      // Predicated region
      $region69: #{tpu_custom_call.1} parent=5 // pred_check
        %p1591 = pneg %p1590
      $region70: #{tpu_custom_call.1} parent=5 // pred_check_branch
        %1593 = sbr.rel (%p1591) target = $region72
      $region71: #{tpu_custom_call.1} parent=5 // pred_region
        %s1594 = ssub.s32 %s20, 2
        // Predicated region
        $region73: #{tpu_custom_call.1} parent=71 // pred_check
          %p1595 = pneg %p134
        $region74: #{tpu_custom_call.1} parent=71 // pred_check_branch
          %1597 = sbr.rel (%p1595) target = $region76
        $region75: #{tpu_custom_call.1} parent=71 // pred_region
          %s1598 = smul.u32 16, %s31
          %p1599 = scmp.lt.s32.totalorder %s1598, 31
          %s1600 = scalar_select %p1599, %s1598, 31
          %s1601 = smul.addr %s1600, 8
          %s1602 = scalar_lea.vmem %s3, %s1601
        $region76: #{tpu_custom_call.1} parent=71 // pred_fallthru
          _
        // Predicated region
        $region77: #{tpu_custom_call.1} parent=71 // pred_check
          %p1603 = pneg %p160
        $region78: #{tpu_custom_call.1} parent=71 // pred_check_branch
          %1605 = sbr.rel (%p1603) target = $region80
        $region79: #{tpu_custom_call.1} parent=71 // pred_region
          %s1606 = smul.u32 16, %s31
          %p1607 = scmp.lt.s32.totalorder %s1606, 31
          %s1608 = scalar_select %p1607, %s1606, 31
          %s1609 = smul.addr %s1608, 8
          %s1610 = scalar_lea.vmem %s4, %s1609
        $region80: #{tpu_custom_call.1} parent=71 // pred_fallthru
          _
        // Predicated region
        $region81: #{tpu_custom_call.1} parent=71 // pred_check
          %p1611 = pneg %p188
        $region82: #{tpu_custom_call.1} parent=71 // pred_check_branch
          %1613 = sbr.rel (%p1611) target = $region84
        $region83: #{tpu_custom_call.1} parent=71 // pred_region
          %s1614 = sand.u32 %s173, 1
          %s1615 = scalar_lea.sflag [#allocation6], %s1614
          %s1616 = sand.u32 %s173, 1
          %s1617 = scalar_lea.vmem [#allocation5], %s1616
          %1618 = dma.done %s1615, 16
        $region84: #{tpu_custom_call.1} parent=71 // pred_fallthru
          _
        // Predicated region
        $region85: #{tpu_custom_call.1} parent=71 // pred_check
          %p1619 = pneg %p216
        $region86: #{tpu_custom_call.1} parent=71 // pred_check_branch
          %1621 = sbr.rel (%p1619) target = $region88
        $region87: #{tpu_custom_call.1} parent=71 // pred_region
          %s1622 = sand.u32 %s201, 1
          %s1623 = scalar_lea.sflag [#allocation8], %s1622
          %s1624 = sand.u32 %s201, 1
          %s1625 = scalar_lea.vmem [#allocation7], %s1624
          %1626 = dma.done %s1623, 16
        $region88: #{tpu_custom_call.1} parent=71 // pred_fallthru
          _
      $region72: #{tpu_custom_call.1} parent=5 // pred_fallthru
        _
    $region6: #{tpu_custom_call.1} parent=1 // loop_footer
      %s24 = sadd.s32 1, %s20
    $region7: #{tpu_custom_call.1} parent=1 // loop_footer_branch
      %19 = sbr.rel target = $region3
    $region8: #{tpu_custom_call.1} parent=1 // loop_exit
      _
    %1627 = vsyncpa [#allocation6], 1
    %s1628 = scalar_lea.sflag [#allocation6], 1
    %1629 = vsyncpa %s1628, 1
    %1630 = vsyncpa [#allocation8], 1
    %s1631 = scalar_lea.sflag [#allocation8], 1
    %1632 = vsyncpa %s1631, 1

</llo_original>
